<compile_context>
chip_gen: v6e
topology: v6e:2x2x1
jax: 0.10.0
libtpu: 0.0.40
codegen_flags: <defaults>
</compile_context>

<pallas_src>
import jax
import jax.numpy as jnp
from jax.experimental import pallas as pl
from jax.experimental.pallas import tpu as pltpu

_LANE = 128
_SUBLANE = 8
_NEG_BIG = -1e30     # Python float, baked into the last bias pad in the wrapper
                     # (never captured as a traced constant inside the kernel).


def _round_up(x, m):
    return ((x + m - 1) // m) * m


def _cdiv(a, b):
    return -(-a // b)


def _vmem_capacity_bytes():
    """Per-core VMEM capacity; conservative v7x default if the query is unavailable."""
    try:
        return int(pltpu.get_tpu_info().vmem_capacity_bytes)
    except Exception:
        return 64 << 20


def _make_mlp_kernel(num_linears, relu_after):
    """Fused chain of linears (+ReLU where PyTorch puts it) + log_softmax.

    refs = (x_ref, w0, b0, w1, b1, ..., out_ref).
    x / weights arrive in the bf16 compute dtype; biases and the softmax are f32.
    Padded lanes of the last layer's bias already hold -1e30, so no masking here.
    """

    def kernel(*refs):
        x_ref = refs[0]
        out_ref = refs[-1]

        h = x_ref[...]
        for li in range(num_linears):
            w_ref = refs[1 + 2 * li]     # (d_in_p, d_out_p), compute dtype
            b_ref = refs[2 + 2 * li]     # (1, d_out_p), f32
            lhs = h if h.dtype == w_ref.dtype else h.astype(w_ref.dtype)
            h = jnp.dot(lhs, w_ref[...],
                        preferred_element_type=jnp.float32) + b_ref[...]
            if li in relu_after:
                h = jnp.maximum(h, 0.0)
            # Dropout (if present in the Sequential) is identity at inference.

        # log_softmax over dim=1, numerically stable. Padded lanes carry -1e30 from
        # the bias, so exp() underflows to 0 and they don't perturb the normalizer.
        m = jnp.max(h, axis=1, keepdims=True)
        s = h - m
        lse = jnp.log(jnp.sum(jnp.exp(s), axis=1, keepdims=True))
        out_ref[...] = (s - lse).astype(out_ref.dtype)

    return kernel


def _tile_map(i):        # streamed x / out tiles move along the batch axis
    return (i, 0)


def _resident_map(i):    # weights / biases stay pinned to block (0, 0)
    return (0, 0)


def mlp_forward(x, weights, biases, *, tile_n=512, compute_dtype=jnp.bfloat16,
                out_dtype=jnp.float32):
    """x: (N, input_dim). weights[i]: (d_in_i, d_out_i) (already (in, out), i.e. the
    transpose of the PyTorch Linear weight). biases[i]: (d_out_i,).
    Returns log_softmax(MLP(x), dim=1) of shape (N, output_dim) in `out_dtype`.
    Pass compute_dtype=jnp.float32 as an accuracy escape hatch for trained weights."""
    N, input_dim = x.shape
    num_linears = len(weights)
    output_dim = weights[-1].shape[1]
    # ReLU follows hidden->hidden linears only: indices 1 .. num_linears-2.
    relu_after = frozenset(range(1, num_linears - 1))

    # ---- feature-dim padding ----
    d_ins = [w.shape[0] for w in weights]
    d_outs = [w.shape[1] for w in weights]
    d_outs_p = [_round_up(d, _LANE) for d in d_outs]          # lane-dense outputs
    # Layer-0 K matches the streamed x: keep it at its natural width (no padded HBM
    # traffic). Hidden K dims follow the previous layer's padded output width.
    d_ins_p = [d_ins[0]] + d_outs_p[:-1]
    out_pad = d_outs_p[-1]

    # ---- batch tiling (cdiv-balanced so unlucky N doesn't waste ~a full tile) ----
    tile_n = max(_SUBLANE, _round_up(tile_n, _SUBLANE))
    num_tiles = _cdiv(N, tile_n)
    TILE_N = _round_up(_cdiv(N, num_tiles), _SUBLANE)
    N_pad = num_tiles * TILE_N

    # Streamed input: bf16, batch-padded only (K dim left at its natural width).
    x_p = jnp.pad(x.astype(compute_dtype), ((0, N_pad - N), (0, 0)))

    # ---- pad / cast parameters (resident in VMEM) ----
    w_list, b_list = [], []
    for li, (w, b, di, do, dip, dop) in enumerate(
            zip(weights, biases, d_ins, d_outs, d_ins_p, d_outs_p)):
        w_p = jnp.pad(w, ((0, dip - di), (0, dop - do))).astype(compute_dtype)
        b_f32 = b.astype(jnp.float32)
        if li == num_linears - 1 and dop > do:
            # Padded output lanes equal their bias exactly (padded weight cols are 0):
            # bake the softmax mask into the bias pad, so the kernel needs no iota/where.
            b_p = jnp.concatenate(
                [b_f32, jnp.full((dop - do,), _NEG_BIG, jnp.float32)])
        else:
            b_p = jnp.pad(b_f32, (0, dop - do))
        w_list.append(w_p)
        b_list.append(b_p.reshape(1, dop))

    flat_inputs = [x_p]
    for w_p, b_p in zip(w_list, b_list):
        flat_inputs += [w_p, b_p]

    kernel = _make_mlp_kernel(num_linears, relu_after)

    # ---- VMEM budget (loud failure instead of silent truncation) ----
    itemsize_c = jnp.dtype(compute_dtype).itemsize
    itemsize_o = jnp.dtype(out_dtype).itemsize
    resident_bytes = sum(int(a.size) * a.dtype.itemsize for a in flat_inputs[1:])
    stream_bytes = 2 * TILE_N * (input_dim * itemsize_c + out_pad * itemsize_o)
    max_dim_p = max(d_outs_p + [input_dim])
    live_bytes = 6 * TILE_N * max_dim_p * 4                   # in-flight f32 temps
    vmem_cap = _vmem_capacity_bytes()
    headroom = 8 << 20                                        # compiler scratch / sems
    if resident_bytes + stream_bytes + live_bytes > vmem_cap - headroom:
        # TODO(synk): add a K-tiled / streamed-weight fallback (extra "arbitrary"
        # grid axis + f32 VMEM accumulator) for layers too wide to keep resident.
        raise ValueError(
            f"MLP parameters ({resident_bytes / 2**20:.1f} MiB) + working set exceed "
            f"the {vmem_cap / 2**20:.0f} MiB VMEM budget; weight residency is "
            "required by this kernel.")
    need_double = 2 * resident_bytes + stream_bytes + live_bytes
    vmem_limit = min(int(1.25 * need_double) + (2 << 20), vmem_cap - headroom)
    vmem_limit = max(vmem_limit, 8 << 20)

    # ---- cost estimate for the surrounding XLA scheduler ----
    flops = 2 * N_pad * sum(dip * dop for dip, dop in zip(d_ins_p, d_outs_p))
    transcendentals = N_pad * out_pad + N_pad                  # exp + log per row
    bytes_accessed = (int(x_p.size) * itemsize_c
                      + resident_bytes
                      + N_pad * out_pad * itemsize_o)
    cost = pl.CostEstimate(flops=int(flops),
                           transcendentals=int(transcendentals),
                           bytes_accessed=int(bytes_accessed))

    def _run(single_buffer_params):
        # Resident params never change block index -> single-buffer them (halves
        # their VMEM cost). Fall back to default pipelining if unsupported.
        param_kw = dict(pipeline_mode=pl.Buffered(1)) if single_buffer_params else {}
        in_specs = [pl.BlockSpec((TILE_N, input_dim), _tile_map)]
        for w_p, b_p in zip(w_list, b_list):
            in_specs.append(pl.BlockSpec(w_p.shape, _resident_map, **param_kw))
            in_specs.append(pl.BlockSpec(b_p.shape, _resident_map, **param_kw))
        return pl.pallas_call(
            kernel,
            out_shape=jax.ShapeDtypeStruct((N_pad, out_pad), out_dtype),
            grid=(num_tiles,),
            in_specs=in_specs,
            out_specs=pl.BlockSpec((TILE_N, out_pad), _tile_map),
            compiler_params=pltpu.CompilerParams(
                dimension_semantics=("parallel",),   # rows independent -> megacore
                vmem_limit_bytes=vmem_limit,
            ),
            cost_estimate=cost,
        )(*flat_inputs)

    try:
        out = _run(True)
    except Exception:
        # pipeline_mode / pl.Buffered not supported on this jax version -> default
        # double-buffered specs (correctness identical, slightly more VMEM).
        out = _run(False)

    # Padded rows / lanes are sliced off outside; the kernel's store stays lane-dense.
    return out[:N, :output_dim]


def init_mlp_params(key, input_dim, output_dim, n_hidden_layers, hidden_dim):
    """Deterministic init matching nn.init.normal_(std=0.01) weights, zero bias.
    Weights are returned already transposed to (in, out) for the kernel."""
    dims = []
    if n_hidden_layers > 0:
        dims.append((input_dim, hidden_dim))
        for _ in range(n_hidden_layers - 1):
            dims.append((hidden_dim, hidden_dim))
        dims.append((hidden_dim, output_dim))
    else:
        dims.append((input_dim, output_dim))

    weights, biases = [], []
    for (d_in, d_out) in dims:
        key, sub = jax.random.split(key)
        w = 0.01 * jax.random.normal(sub, (d_in, d_out), dtype=jnp.float32)
        b = jnp.zeros((d_out,), dtype=jnp.float32)
        weights.append(w)
        biases.append(b)
    return weights, biases


def mlp_reference(x, weights, biases):
    """Pure-JAX f32 reference mirroring the PyTorch Sequential for validation."""
    num_linears = len(weights)
    relu_after = set(range(1, num_linears - 1))
    h = x
    for li, (w, b) in enumerate(zip(weights, biases)):
        h = h @ w + b
        if li in relu_after:
            h = jnp.maximum(h, 0.0)
    return jax.nn.log_softmax(h, axis=1)


if __name__ == "__main__":
    # Small, MLP-consistent shapes; N chosen so the tiled/pipelined path is exercised.
    N, input_dim, hidden_dim, output_dim = 200, 16, 32, 8
    n_hidden_layers, dropout = 2, 0.5   # dropout is identity at inference

    key = jax.random.PRNGKey(0)
    key, xkey = jax.random.split(key)
    x = jax.random.normal(xkey, (N, input_dim), dtype=jnp.float32)

    weights, biases = init_mlp_params(
        key, input_dim, output_dim, n_hidden_layers, hidden_dim
    )

    # tile_n=64 so this toy N=200 still runs multiple grid steps (production: 512+).
    out = mlp_forward(x, weights, biases, tile_n=64)
    out = jax.block_until_ready(out)

    ref = mlp_reference(x, weights, biases)
    assert out.shape == (N, output_dim)
    max_err = float(jnp.max(jnp.abs(out - ref)))
    assert jnp.allclose(out, ref, atol=3e-3, rtol=3e-3), f"mismatch vs reference ({max_err})"

    print("KERNEL_OK")
</pallas_src>

<mosaic_0001>
module attributes {stable_mosaic.version = 11 : i64} {
  func.func @kernel(%arg0: i32, %arg1: memref<56x16xbf16, #tpu.memory_space<vmem>>, %arg2: memref<16x128xbf16, #tpu.memory_space<vmem>>, %arg3: memref<1x128xf32, #tpu.memory_space<vmem>>, %arg4: memref<128x128xbf16, #tpu.memory_space<vmem>>, %arg5: memref<1x128xf32, #tpu.memory_space<vmem>>, %arg6: memref<128x128xbf16, #tpu.memory_space<vmem>>, %arg7: memref<1x128xf32, #tpu.memory_space<vmem>>, %arg8: memref<56x128xf32, #tpu.memory_space<vmem>>) attributes {dimension_semantics = [#tpu.dimension_semantics<parallel>], iteration_bounds = array<i64: 4>, scalar_prefetch = 0 : i64, scratch_operands = 0 : i64, tpu.core_type = #tpu.core_type<tc>, window_params = [{transform_indices = @transform_0, window_bounds = array<i64: 56, 16>}, {pipeline_mode = #tpu.pipeline_mode<synchronous>, transform_indices = @transform_1, window_bounds = array<i64: 16, 128>}, {pipeline_mode = #tpu.pipeline_mode<synchronous>, transform_indices = @transform_2, window_bounds = array<i64: 1, 128>}, {pipeline_mode = #tpu.pipeline_mode<synchronous>, transform_indices = @transform_3, window_bounds = array<i64: 128, 128>}, {pipeline_mode = #tpu.pipeline_mode<synchronous>, transform_indices = @transform_4, window_bounds = array<i64: 1, 128>}, {pipeline_mode = #tpu.pipeline_mode<synchronous>, transform_indices = @transform_5, window_bounds = array<i64: 128, 128>}, {pipeline_mode = #tpu.pipeline_mode<synchronous>, transform_indices = @transform_6, window_bounds = array<i64: 1, 128>}, {transform_indices = @transform_7, window_bounds = array<i64: 56, 128>}]} {
    %c0 = arith.constant 0 : index
    %c0_0 = arith.constant 0 : index
    %0 = vector.load %arg1[%c0, %c0_0] : memref<56x16xbf16, #tpu.memory_space<vmem>>, vector<56x16xbf16>
    %c0_1 = arith.constant 0 : index
    %c0_2 = arith.constant 0 : index
    %1 = vector.load %arg2[%c0_1, %c0_2] : memref<16x128xbf16, #tpu.memory_space<vmem>>, vector<16x128xbf16>
    %cst = arith.constant dense<0.000000e+00> : vector<56x128xf32>
    %2 = tpu.matmul %0, %1, %cst {dimension_numbers = #tpu.dot_dimension_numbers<[1], [0], [0], [1], [0, 0, 1, 1], [], []>} : vector<56x16xbf16>, vector<16x128xbf16>, vector<56x128xf32> -> vector<56x128xf32>
    %c0_3 = arith.constant 0 : index
    %c0_4 = arith.constant 0 : index
    %3 = vector.load %arg3[%c0_3, %c0_4] : memref<1x128xf32, #tpu.memory_space<vmem>>, vector<1x128xf32>
    %4 = vector.broadcast %3 : vector<1x128xf32> to vector<56x128xf32>
    %5 = arith.addf %2, %4 : vector<56x128xf32>
    %6 = arith.truncf %5 : vector<56x128xf32> to vector<56x128xbf16>
    %c0_5 = arith.constant 0 : index
    %c0_6 = arith.constant 0 : index
    %7 = vector.load %arg4[%c0_5, %c0_6] : memref<128x128xbf16, #tpu.memory_space<vmem>>, vector<128x128xbf16>
    %cst_7 = arith.constant dense<0.000000e+00> : vector<56x128xf32>
    %8 = tpu.matmul %6, %7, %cst_7 {dimension_numbers = #tpu.dot_dimension_numbers<[1], [0], [0], [1], [0, 0, 1, 1], [], []>} : vector<56x128xbf16>, vector<128x128xbf16>, vector<56x128xf32> -> vector<56x128xf32>
    %c0_8 = arith.constant 0 : index
    %c0_9 = arith.constant 0 : index
    %9 = vector.load %arg5[%c0_8, %c0_9] : memref<1x128xf32, #tpu.memory_space<vmem>>, vector<1x128xf32>
    %10 = vector.broadcast %9 : vector<1x128xf32> to vector<56x128xf32>
    %11 = arith.addf %8, %10 : vector<56x128xf32>
    %cst_10 = arith.constant 0.000000e+00 : f32
    %12 = vector.broadcast %cst_10 : f32 to vector<56x128xf32>
    %13 = arith.maximumf %11, %12 : vector<56x128xf32>
    %14 = arith.truncf %13 : vector<56x128xf32> to vector<56x128xbf16>
    %c0_11 = arith.constant 0 : index
    %c0_12 = arith.constant 0 : index
    %15 = vector.load %arg6[%c0_11, %c0_12] : memref<128x128xbf16, #tpu.memory_space<vmem>>, vector<128x128xbf16>
    %cst_13 = arith.constant dense<0.000000e+00> : vector<56x128xf32>
    %16 = tpu.matmul %14, %15, %cst_13 {dimension_numbers = #tpu.dot_dimension_numbers<[1], [0], [0], [1], [0, 0, 1, 1], [], []>} : vector<56x128xbf16>, vector<128x128xbf16>, vector<56x128xf32> -> vector<56x128xf32>
    %c0_14 = arith.constant 0 : index
    %c0_15 = arith.constant 0 : index
    %17 = vector.load %arg7[%c0_14, %c0_15] : memref<1x128xf32, #tpu.memory_space<vmem>>, vector<1x128xf32>
    %18 = vector.broadcast %17 : vector<1x128xf32> to vector<56x128xf32>
    %19 = arith.addf %16, %18 : vector<56x128xf32>
    %cst_16 = arith.constant dense<0xFF800000> : vector<56xf32>
    %20 = vector.multi_reduction <maximumf>, %19, %cst_16 [1] : vector<56x128xf32> to vector<56xf32>
    %21 = vector.shape_cast %20 : vector<56xf32> to vector<56x1xf32>
    %22 = vector.broadcast %21 : vector<56x1xf32> to vector<56x128xf32>
    %23 = arith.subf %19, %22 : vector<56x128xf32>
    %24 = math.exp %23 : vector<56x128xf32>
    %cst_17 = arith.constant dense<0.000000e+00> : vector<56xf32>
    %25 = vector.multi_reduction <add>, %24, %cst_17 [1] : vector<56x128xf32> to vector<56xf32>
    %26 = vector.shape_cast %25 : vector<56xf32> to vector<56x1xf32>
    %27 = math.log %26 : vector<56x1xf32>
    %28 = vector.broadcast %27 : vector<56x1xf32> to vector<56x128xf32>
    %29 = arith.subf %23, %28 : vector<56x128xf32>
    %c0_18 = arith.constant 0 : index
    %c0_19 = arith.constant 0 : index
    %30 = vector.load %arg8[%c0_18, %c0_19] : memref<56x128xf32, #tpu.memory_space<vmem>>, vector<56x128xf32>
    tpu.vector_store %arg8[%c0_18, %c0_19], %29 {strides = array<i32>} : memref<56x128xf32, #tpu.memory_space<vmem>>, vector<56x128xf32>,
    return
  }
  func.func @transform_0(%arg0: i32) -> (i32, i32) {
    %c0_i32 = arith.constant 0 : i32
    %c0_i32_0 = arith.constant 0 : i32
    return %arg0, %c0_i32 : i32, i32
  }
  func.func @transform_1(%arg0: i32) -> (i32, i32) {
    %c0_i32 = arith.constant 0 : i32
    %c0_i32_0 = arith.constant 0 : i32
    %c0_i32_1 = arith.constant 0 : i32
    return %c0_i32, %c0_i32_0 : i32, i32
  }
  func.func @transform_2(%arg0: i32) -> (i32, i32) {
    %c0_i32 = arith.constant 0 : i32
    %c0_i32_0 = arith.constant 0 : i32
    %c0_i32_1 = arith.constant 0 : i32
    return %c0_i32, %c0_i32_0 : i32, i32
  }
  func.func @transform_3(%arg0: i32) -> (i32, i32) {
    %c0_i32 = arith.constant 0 : i32
    %c0_i32_0 = arith.constant 0 : i32
    %c0_i32_1 = arith.constant 0 : i32
    return %c0_i32, %c0_i32_0 : i32, i32
  }
  func.func @transform_4(%arg0: i32) -> (i32, i32) {
    %c0_i32 = arith.constant 0 : i32
    %c0_i32_0 = arith.constant 0 : i32
    %c0_i32_1 = arith.constant 0 : i32
    return %c0_i32, %c0_i32_0 : i32, i32
  }
  func.func @transform_5(%arg0: i32) -> (i32, i32) {
    %c0_i32 = arith.constant 0 : i32
    %c0_i32_0 = arith.constant 0 : i32
    %c0_i32_1 = arith.constant 0 : i32
    return %c0_i32, %c0_i32_0 : i32, i32
  }
  func.func @transform_6(%arg0: i32) -> (i32, i32) {
    %c0_i32 = arith.constant 0 : i32
    %c0_i32_0 = arith.constant 0 : i32
    %c0_i32_1 = arith.constant 0 : i32
    return %c0_i32, %c0_i32_0 : i32, i32
  }
  func.func @transform_7(%arg0: i32) -> (i32, i32) {
    %c0_i32 = arith.constant 0 : i32
    %c0_i32_0 = arith.constant 0 : i32
    return %arg0, %c0_i32 : i32, i32
  }
}

module attributes {stable_mosaic.version = 11 : i64} {
  func.func @kernel(%arg0: i32, %arg1: memref<56x16xbf16, #tpu.memory_space<vmem>>, %arg2: memref<16x128xbf16, #tpu.memory_space<vmem>>, %arg3: memref<1x128xf32, #tpu.memory_space<vmem>>, %arg4: memref<128x128xbf16, #tpu.memory_space<vmem>>, %arg5: memref<1x128xf32, #tpu.memory_space<vmem>>, %arg6: memref<128x128xbf16, #tpu.memory_space<vmem>>, %arg7: memref<1x128xf32, #tpu.memory_space<vmem>>, %arg8: memref<56x128xf32, #tpu.memory_space<vmem>>) attributes {dimension_semantics = [#tpu.dimension_semantics<parallel>], iteration_bounds = array<i64: 4>, scalar_prefetch = 0 : i64, scratch_operands = 0 : i64, tpu.core_type = #tpu.core_type<tc>, window_params = [{transform_indices = @transform_0, window_bounds = array<i64: 56, 16>}, {pipeline_mode = #tpu.pipeline_mode<synchronous>, transform_indices = @transform_1, window_bounds = array<i64: 16, 128>}, {pipeline_mode = #tpu.pipeline_mode<synchronous>, transform_indices = @transform_2, window_bounds = array<i64: 1, 128>}, {pipeline_mode = #tpu.pipeline_mode<synchronous>, transform_indices = @transform_3, window_bounds = array<i64: 128, 128>}, {pipeline_mode = #tpu.pipeline_mode<synchronous>, transform_indices = @transform_4, window_bounds = array<i64: 1, 128>}, {pipeline_mode = #tpu.pipeline_mode<synchronous>, transform_indices = @transform_5, window_bounds = array<i64: 128, 128>}, {pipeline_mode = #tpu.pipeline_mode<synchronous>, transform_indices = @transform_6, window_bounds = array<i64: 1, 128>}, {transform_indices = @transform_7, window_bounds = array<i64: 56, 128>}]} {
    %c0 = arith.constant 0 : index
    %c0_0 = arith.constant 0 : index
    %0 = vector.load %arg1[%c0, %c0_0] : memref<56x16xbf16, #tpu.memory_space<vmem>>, vector<56x16xbf16>
    %c0_1 = arith.constant 0 : index
    %c0_2 = arith.constant 0 : index
    %1 = vector.load %arg2[%c0_1, %c0_2] : memref<16x128xbf16, #tpu.memory_space<vmem>>, vector<16x128xbf16>
    %cst = arith.constant dense<0.000000e+00> : vector<56x128xf32>
    %2 = tpu.matmul %0, %1, %cst {dimension_numbers = #tpu.dot_dimension_numbers<[1], [0], [0], [1], [0, 0, 1, 1], [], []>} : vector<56x16xbf16>, vector<16x128xbf16>, vector<56x128xf32> -> vector<56x128xf32>
    %c0_3 = arith.constant 0 : index
    %c0_4 = arith.constant 0 : index
    %3 = vector.load %arg3[%c0_3, %c0_4] : memref<1x128xf32, #tpu.memory_space<vmem>>, vector<1x128xf32>
    %4 = vector.broadcast %3 : vector<1x128xf32> to vector<56x128xf32>
    %5 = arith.addf %2, %4 : vector<56x128xf32>
    %6 = arith.truncf %5 : vector<56x128xf32> to vector<56x128xbf16>
    %c0_5 = arith.constant 0 : index
    %c0_6 = arith.constant 0 : index
    %7 = vector.load %arg4[%c0_5, %c0_6] : memref<128x128xbf16, #tpu.memory_space<vmem>>, vector<128x128xbf16>
    %cst_7 = arith.constant dense<0.000000e+00> : vector<56x128xf32>
    %8 = tpu.matmul %6, %7, %cst_7 {dimension_numbers = #tpu.dot_dimension_numbers<[1], [0], [0], [1], [0, 0, 1, 1], [], []>} : vector<56x128xbf16>, vector<128x128xbf16>, vector<56x128xf32> -> vector<56x128xf32>
    %c0_8 = arith.constant 0 : index
    %c0_9 = arith.constant 0 : index
    %9 = vector.load %arg5[%c0_8, %c0_9] : memref<1x128xf32, #tpu.memory_space<vmem>>, vector<1x128xf32>
    %10 = vector.broadcast %9 : vector<1x128xf32> to vector<56x128xf32>
    %11 = arith.addf %8, %10 : vector<56x128xf32>
    %cst_10 = arith.constant 0.000000e+00 : f32
    %12 = vector.broadcast %cst_10 : f32 to vector<56x128xf32>
    %13 = arith.maximumf %11, %12 : vector<56x128xf32>
    %14 = arith.truncf %13 : vector<56x128xf32> to vector<56x128xbf16>
    %c0_11 = arith.constant 0 : index
    %c0_12 = arith.constant 0 : index
    %15 = vector.load %arg6[%c0_11, %c0_12] : memref<128x128xbf16, #tpu.memory_space<vmem>>, vector<128x128xbf16>
    %cst_13 = arith.constant dense<0.000000e+00> : vector<56x128xf32>
    %16 = tpu.matmul %14, %15, %cst_13 {dimension_numbers = #tpu.dot_dimension_numbers<[1], [0], [0], [1], [0, 0, 1, 1], [], []>} : vector<56x128xbf16>, vector<128x128xbf16>, vector<56x128xf32> -> vector<56x128xf32>
    %c0_14 = arith.constant 0 : index
    %c0_15 = arith.constant 0 : index
    %17 = vector.load %arg7[%c0_14, %c0_15] : memref<1x128xf32, #tpu.memory_space<vmem>>, vector<1x128xf32>
    %18 = vector.broadcast %17 : vector<1x128xf32> to vector<56x128xf32>
    %19 = arith.addf %16, %18 : vector<56x128xf32>
    %cst_16 = arith.constant dense<0xFF800000> : vector<56xf32>
    %20 = vector.multi_reduction <maximumf>, %19, %cst_16 [1] : vector<56x128xf32> to vector<56xf32>
    %21 = vector.shape_cast %20 : vector<56xf32> to vector<56x1xf32>
    %22 = vector.broadcast %21 : vector<56x1xf32> to vector<56x128xf32>
    %23 = arith.subf %19, %22 : vector<56x128xf32>
    %24 = math.exp %23 : vector<56x128xf32>
    %cst_17 = arith.constant dense<0.000000e+00> : vector<56xf32>
    %25 = vector.multi_reduction <add>, %24, %cst_17 [1] : vector<56x128xf32> to vector<56xf32>
    %26 = vector.shape_cast %25 : vector<56xf32> to vector<56x1xf32>
    %27 = math.log %26 : vector<56x1xf32>
    %28 = vector.broadcast %27 : vector<56x1xf32> to vector<56x128xf32>
    %29 = arith.subf %23, %28 : vector<56x128xf32>
    %c0_18 = arith.constant 0 : index
    %c0_19 = arith.constant 0 : index
    %30 = vector.load %arg8[%c0_18, %c0_19] : memref<56x128xf32, #tpu.memory_space<vmem>>, vector<56x128xf32>
    tpu.vector_store %arg8[%c0_18, %c0_19], %29 {strides = array<i32>} : memref<56x128xf32, #tpu.memory_space<vmem>>, vector<56x128xf32>,
    return
  }
  func.func @transform_0(%arg0: i32) -> (i32, i32) {
    %c0_i32 = arith.constant 0 : i32
    %c0_i32_0 = arith.constant 0 : i32
    return %arg0, %c0_i32 : i32, i32
  }
  func.func @transform_1(%arg0: i32) -> (i32, i32) {
    %c0_i32 = arith.constant 0 : i32
    %c0_i32_0 = arith.constant 0 : i32
    %c0_i32_1 = arith.constant 0 : i32
    return %c0_i32, %c0_i32_0 : i32, i32
  }
  func.func @transform_2(%arg0: i32) -> (i32, i32) {
    %c0_i32 = arith.constant 0 : i32
    %c0_i32_0 = arith.constant 0 : i32
    %c0_i32_1 = arith.constant 0 : i32
    return %c0_i32, %c0_i32_0 : i32, i32
  }
  func.func @transform_3(%arg0: i32) -> (i32, i32) {
    %c0_i32 = arith.constant 0 : i32
    %c0_i32_0 = arith.constant 0 : i32
    %c0_i32_1 = arith.constant 0 : i32
    return %c0_i32, %c0_i32_0 : i32, i32
  }
  func.func @transform_4(%arg0: i32) -> (i32, i32) {
    %c0_i32 = arith.constant 0 : i32
    %c0_i32_0 = arith.constant 0 : i32
    %c0_i32_1 = arith.constant 0 : i32
    return %c0_i32, %c0_i32_0 : i32, i32
  }
  func.func @transform_5(%arg0: i32) -> (i32, i32) {
    %c0_i32 = arith.constant 0 : i32
    %c0_i32_0 = arith.constant 0 : i32
    %c0_i32_1 = arith.constant 0 : i32
    return %c0_i32, %c0_i32_0 : i32, i32
  }
  func.func @transform_6(%arg0: i32) -> (i32, i32) {
    %c0_i32 = arith.constant 0 : i32
    %c0_i32_0 = arith.constant 0 : i32
    %c0_i32_1 = arith.constant 0 : i32
    return %c0_i32, %c0_i32_0 : i32, i32
  }
  func.func @transform_7(%arg0: i32) -> (i32, i32) {
    %c0_i32 = arith.constant 0 : i32
    %c0_i32_0 = arith.constant 0 : i32
    return %arg0, %c0_i32 : i32, i32
  }
}

</mosaic_0001>

<llo_original>
// kernel: tpu_custom_call.1
$region0: #{tpu_custom_call.1}
  #allocation0 [shape = 'u32[]', space=smem, size = 0x4, offset = 0x4, fixed_abs, tag = 'smem constant byte address 0x4 - core index']
  #allocation1 [shape = 'u32[144,128]{1,0:T(1,128)}', space=vmem, size = 0x12000, scoped, tag = 'internal scratch']
  %s0 = inlined_call_operand.vmem [shape: bf16[224,16], index: 0, kind: input, shape index: {}]
  %s1 = inlined_call_operand.hbm [shape: bf16[16,128], index: 1, kind: input, shape index: {}]
  %s2 = inlined_call_operand.vmem [shape: f32[1,128], index: 2, kind: input, shape index: {}]
  %s3 = inlined_call_operand.vmem [shape: bf16[128,128], index: 3, kind: input, shape index: {}]
  %s4 = inlined_call_operand.vmem [shape: f32[1,128], index: 4, kind: input, shape index: {}]
  %s5 = inlined_call_operand.vmem [shape: bf16[128,128], index: 5, kind: input, shape index: {}]
  %s6 = inlined_call_operand.vmem [shape: f32[1,128], index: 6, kind: input, shape index: {}]
  %s7 = inlined_call_operand.hbm [shape: f32[224,128], index: 7, kind: output, shape index: {}]
  %s8 = sld [smem:[#allocation0]]
  $region65: #{tpu_custom_call.1} parent=0
    _
  %s10 = ssub.s32 1, %s8
  %s11 = scalar_select 0, %s10, %s8
  $region1: #{tpu_custom_call.1} parent=0
    #allocation2 [shape = 'u8[4096]{0}', space=vmem, size = 0x1000, scoped, tag = 'input window, operand 1, single buffered']
    #allocation3 [shape = 's32[2]{0}', space=sflag, size = 0x8, scoped, tag = 'scoped memory for tpu_custom_call.1']
    #allocation4 [shape = 's32[2]{0}', space=sflag, size = 0x8, scoped, tag = 'scoped memory for tpu_custom_call.1']
    #allocation5 [shape = 'u8[57344]{0}', space=vmem, size = 0xe000, scoped, tag = 'output window, operand 0']
    %12 = vsyncpa [#allocation3], 0
    %13 = vsyncpa [#allocation4], 0
    %s14 = scalar_lea.sflag [#allocation4], 1
    %15 = vsyncpa %s14, 0
    loop: start=0, step=1, limit=6
    $region2: #{tpu_custom_call.1} parent=1 // loop_pre_header
      _
    $region3: #{tpu_custom_call.1} parent=1 // loop_header
      %s17 = sphi 0, %s21
      %p18 = scmp.ge.s32.totalorder %s17, 6
      %s27 = sphi 0, %s29
      %s30 = sphi 0, %s27
      %s31 = sphi 0, %s30
      %s47 = sphi 0, %s31
      %s51 = sphi 0, %s51
      %s53 = sphi 0, %s51
      %s54 = sphi 0, %s53
      %s68 = sphi 0, %s54
      %s72 = sphi 0, %s72
      %s74 = sphi 0, %s72
      %s75 = sphi 0, %s74
      %s89 = sphi 0, %s75
      %s93 = sphi 0, %s93
      %s95 = sphi 0, %s93
      %s96 = sphi 0, %s95
      %s110 = sphi 0, %s96
      %s114 = sphi 0, %s114
      %s116 = sphi 0, %s114
      %s117 = sphi 0, %s116
      %s131 = sphi 0, %s117
      %s135 = sphi 0, %s135
      %s137 = sphi 0, %s135
      %s138 = sphi 0, %s137
      %s152 = sphi 0, %s138
      %s156 = sphi 0, %s156
      %s158 = sphi 0, %s156
      %s159 = sphi 0, %s158
      %s173 = sphi 0, %s159
      %s179 = sphi 0, %s181
      %s182 = sphi 0, %s179
      %s183 = sphi 0, %s182
      %s199 = sphi 0, %s183
    $region4: #{tpu_custom_call.1} parent=1 // loop_header_branch
      %20 = sbr.rel (%p18) target = $region8
    $region5: #{tpu_custom_call.1} parent=1 // loop_body
      %s22 = ssub.s32 %s17, 1
      %s23 = ssub.s32 %s17, 2
      %s24 = sadd.s32 %s17, 1
      %s25 = ssub.s32 %s17, %s24
      %p26 = scmp.eq.s32.totalorder %s25, 0
      %s28 = sadd.s32 %s27, 1
      %s29 = scalar_select %p26, %s27, %s28
      %p32 = pneg %p26
      %p33 = scmp.eq.s32.totalorder %s17, 3
      %p34 = por %p32, %p33
      %p35 = scmp.ne.s32.totalorder %s27, %s30
      %p36 = scmp.eq.s32.totalorder %s17, 0
      %p37 = por %p35, %p36
      %p38 = scmp.ne.s32.totalorder %s27, %s30
      %p39 = scmp.eq.s32.totalorder %s22, 3
      %p40 = por %p38, %p39
      %p41 = scmp.ne.s32.totalorder %s30, %s31
      %p42 = scmp.eq.s32.totalorder %s22, 0
      %p43 = por %p41, %p42
      %p44 = scmp.ne.s32.totalorder %s30, %s31
      %p45 = scmp.eq.s32.totalorder %s23, 3
      %p46 = por %p44, %p45
      %p48 = scmp.ne.s32.totalorder %s31, %s47
      %p49 = scmp.eq.s32.totalorder %s23, 0
      %p50 = por %p48, %p49
      %s52 = sadd.s32 %s51, 1
      %p55 = scmp.eq.s32.totalorder %s17, 3
      %p56 = scmp.ne.s32.totalorder %s51, %s53
      %p57 = scmp.eq.s32.totalorder %s17, 0
      %p58 = por %p56, %p57
      %p59 = scmp.ne.s32.totalorder %s51, %s53
      %p60 = scmp.eq.s32.totalorder %s22, 3
      %p61 = por %p59, %p60
      %p62 = scmp.ne.s32.totalorder %s53, %s54
      %p63 = scmp.eq.s32.totalorder %s22, 0
      %p64 = por %p62, %p63
      %p65 = scmp.ne.s32.totalorder %s53, %s54
      %p66 = scmp.eq.s32.totalorder %s23, 3
      %p67 = por %p65, %p66
      %p69 = scmp.ne.s32.totalorder %s54, %s68
      %p70 = scmp.eq.s32.totalorder %s23, 0
      %p71 = por %p69, %p70
      %s73 = sadd.s32 %s72, 1
      %p76 = scmp.eq.s32.totalorder %s17, 3
      %p77 = scmp.ne.s32.totalorder %s72, %s74
      %p78 = scmp.eq.s32.totalorder %s17, 0
      %p79 = por %p77, %p78
      %p80 = scmp.ne.s32.totalorder %s72, %s74
      %p81 = scmp.eq.s32.totalorder %s22, 3
      %p82 = por %p80, %p81
      %p83 = scmp.ne.s32.totalorder %s74, %s75
      %p84 = scmp.eq.s32.totalorder %s22, 0
      %p85 = por %p83, %p84
      %p86 = scmp.ne.s32.totalorder %s74, %s75
      %p87 = scmp.eq.s32.totalorder %s23, 3
      %p88 = por %p86, %p87
      %p90 = scmp.ne.s32.totalorder %s75, %s89
      %p91 = scmp.eq.s32.totalorder %s23, 0
      %p92 = por %p90, %p91
      %s94 = sadd.s32 %s93, 1
      %p97 = scmp.eq.s32.totalorder %s17, 3
      %p98 = scmp.ne.s32.totalorder %s93, %s95
      %p99 = scmp.eq.s32.totalorder %s17, 0
      %p100 = por %p98, %p99
      %p101 = scmp.ne.s32.totalorder %s93, %s95
      %p102 = scmp.eq.s32.totalorder %s22, 3
      %p103 = por %p101, %p102
      %p104 = scmp.ne.s32.totalorder %s95, %s96
      %p105 = scmp.eq.s32.totalorder %s22, 0
      %p106 = por %p104, %p105
      %p107 = scmp.ne.s32.totalorder %s95, %s96
      %p108 = scmp.eq.s32.totalorder %s23, 3
      %p109 = por %p107, %p108
      %p111 = scmp.ne.s32.totalorder %s96, %s110
      %p112 = scmp.eq.s32.totalorder %s23, 0
      %p113 = por %p111, %p112
      %s115 = sadd.s32 %s114, 1
      %p118 = scmp.eq.s32.totalorder %s17, 3
      %p119 = scmp.ne.s32.totalorder %s114, %s116
      %p120 = scmp.eq.s32.totalorder %s17, 0
      %p121 = por %p119, %p120
      %p122 = scmp.ne.s32.totalorder %s114, %s116
      %p123 = scmp.eq.s32.totalorder %s22, 3
      %p124 = por %p122, %p123
      %p125 = scmp.ne.s32.totalorder %s116, %s117
      %p126 = scmp.eq.s32.totalorder %s22, 0
      %p127 = por %p125, %p126
      %p128 = scmp.ne.s32.totalorder %s116, %s117
      %p129 = scmp.eq.s32.totalorder %s23, 3
      %p130 = por %p128, %p129
      %p132 = scmp.ne.s32.totalorder %s117, %s131
      %p133 = scmp.eq.s32.totalorder %s23, 0
      %p134 = por %p132, %p133
      %s136 = sadd.s32 %s135, 1
      %p139 = scmp.eq.s32.totalorder %s17, 3
      %p140 = scmp.ne.s32.totalorder %s135, %s137
      %p141 = scmp.eq.s32.totalorder %s17, 0
      %p142 = por %p140, %p141
      %p143 = scmp.ne.s32.totalorder %s135, %s137
      %p144 = scmp.eq.s32.totalorder %s22, 3
      %p145 = por %p143, %p144
      %p146 = scmp.ne.s32.totalorder %s137, %s138
      %p147 = scmp.eq.s32.totalorder %s22, 0
      %p148 = por %p146, %p147
      %p149 = scmp.ne.s32.totalorder %s137, %s138
      %p150 = scmp.eq.s32.totalorder %s23, 3
      %p151 = por %p149, %p150
      %p153 = scmp.ne.s32.totalorder %s138, %s152
      %p154 = scmp.eq.s32.totalorder %s23, 0
      %p155 = por %p153, %p154
      %s157 = sadd.s32 %s156, 1
      %p160 = scmp.eq.s32.totalorder %s17, 3
      %p161 = scmp.ne.s32.totalorder %s156, %s158
      %p162 = scmp.eq.s32.totalorder %s17, 0
      %p163 = por %p161, %p162
      %p164 = scmp.ne.s32.totalorder %s156, %s158
      %p165 = scmp.eq.s32.totalorder %s22, 3
      %p166 = por %p164, %p165
      %p167 = scmp.ne.s32.totalorder %s158, %s159
      %p168 = scmp.eq.s32.totalorder %s22, 0
      %p169 = por %p167, %p168
      %p170 = scmp.ne.s32.totalorder %s158, %s159
      %p171 = scmp.eq.s32.totalorder %s23, 3
      %p172 = por %p170, %p171
      %p174 = scmp.ne.s32.totalorder %s159, %s173
      %p175 = scmp.eq.s32.totalorder %s23, 0
      %p176 = por %p174, %p175
      %s177 = ssub.s32 %s17, %s24
      %p178 = scmp.eq.s32.totalorder %s177, 0
      %s180 = sadd.s32 %s179, 1
      %s181 = scalar_select %p178, %s179, %s180
      %p184 = pneg %p178
      %p185 = scmp.eq.s32.totalorder %s17, 3
      %p186 = por %p184, %p185
      %p187 = scmp.ne.s32.totalorder %s179, %s182
      %p188 = scmp.eq.s32.totalorder %s17, 0
      %p189 = por %p187, %p188
      %p190 = scmp.ne.s32.totalorder %s179, %s182
      %p191 = scmp.eq.s32.totalorder %s22, 3
      %p192 = por %p190, %p191
      %p193 = scmp.ne.s32.totalorder %s182, %s183
      %p194 = scmp.eq.s32.totalorder %s22, 0
      %p195 = por %p193, %p194
      %p196 = scmp.ne.s32.totalorder %s182, %s183
      %p197 = scmp.eq.s32.totalorder %s23, 3
      %p198 = por %p196, %p197
      %p200 = scmp.ne.s32.totalorder %s183, %s199
      %p201 = scmp.eq.s32.totalorder %s23, 0
      %p202 = por %p200, %p201
      %p203 = scmp.le.s32.totalorder 1, %s17
      %p204 = scmp.lt.s32.totalorder %s17, 5
      %p205 = pnand %p203, %p204
      %p206 = pneg %p205
      // Predicated region
      $region9: #{tpu_custom_call.1} parent=5 // pred_check
        _
      $region10: #{tpu_custom_call.1} parent=5 // pred_check_branch
        %208 = sbr.rel (%p205) target = $region12
      $region11: #{tpu_custom_call.1} parent=5 // pred_region
        %s209 = ssub.s32 %s17, 1
        // Predicated region
        $region13: #{tpu_custom_call.1} parent=11 // pred_check
          %p210 = pneg %p64
        $region14: #{tpu_custom_call.1} parent=11 // pred_check_branch
          %212 = sbr.rel (%p210) target = $region16
        $region15: #{tpu_custom_call.1} parent=11 // pred_region
          %s214 = ssub.s32 128, 128
          %215 = vsyncadd [#allocation3], %s214
          %s216 = sshll.u32 [#allocation2], 4
          %s217 = int_to_ptr.vmem [resolvable:$true] %s216
          %222 = dma.hbm_to_vmem [thread:$0]  %s1, 128, %s217, [#allocation3], 64, 64, 4
        $region16: #{tpu_custom_call.1} parent=11 // pred_fallthru
          _
        // Predicated region
        $region17: #{tpu_custom_call.1} parent=11 // pred_check
          %p223 = pneg %p85
        $region18: #{tpu_custom_call.1} parent=11 // pred_check_branch
          %225 = sbr.rel (%p223) target = $region20
        $region19: #{tpu_custom_call.1} parent=11 // pred_region
          _
        $region20: #{tpu_custom_call.1} parent=11 // pred_fallthru
          _
        // Predicated region
        $region21: #{tpu_custom_call.1} parent=11 // pred_check
          %p226 = pneg %p106
        $region22: #{tpu_custom_call.1} parent=11 // pred_check_branch
          %228 = sbr.rel (%p226) target = $region24
        $region23: #{tpu_custom_call.1} parent=11 // pred_region
          _
        $region24: #{tpu_custom_call.1} parent=11 // pred_fallthru
          _
        // Predicated region
        $region25: #{tpu_custom_call.1} parent=11 // pred_check
          %p229 = pneg %p127
        $region26: #{tpu_custom_call.1} parent=11 // pred_check_branch
          %231 = sbr.rel (%p229) target = $region28
        $region27: #{tpu_custom_call.1} parent=11 // pred_region
          _
        $region28: #{tpu_custom_call.1} parent=11 // pred_fallthru
          _
        // Predicated region
        $region29: #{tpu_custom_call.1} parent=11 // pred_check
          %p232 = pneg %p148
        $region30: #{tpu_custom_call.1} parent=11 // pred_check_branch
          %234 = sbr.rel (%p232) target = $region32
        $region31: #{tpu_custom_call.1} parent=11 // pred_region
          _
        $region32: #{tpu_custom_call.1} parent=11 // pred_fallthru
          _
        // Predicated region
        $region33: #{tpu_custom_call.1} parent=11 // pred_check
          %p235 = pneg %p169
        $region34: #{tpu_custom_call.1} parent=11 // pred_check_branch
          %237 = sbr.rel (%p235) target = $region36
        $region35: #{tpu_custom_call.1} parent=11 // pred_region
          _
        $region36: #{tpu_custom_call.1} parent=11 // pred_fallthru
          _
      $region12: #{tpu_custom_call.1} parent=5 // pred_fallthru
        _
      %p238 = scmp.lt.s32.totalorder %s17, 4
      // Predicated region
      $region37: #{tpu_custom_call.1} parent=5 // pred_check
        %p239 = pneg %p238
      $region38: #{tpu_custom_call.1} parent=5 // pred_check_branch
        %241 = sbr.rel (%p239) target = $region40
      $region39: #{tpu_custom_call.1} parent=5 // pred_region
        // Predicated region
        $region41: #{tpu_custom_call.1} parent=39 // pred_check
          %p242 = pneg %p37
        $region42: #{tpu_custom_call.1} parent=39 // pred_check_branch
          %244 = sbr.rel (%p242) target = $region44
        $region43: #{tpu_custom_call.1} parent=39 // pred_region
          %s245 = smul.u32 7, %s17
          %p246 = scmp.lt.s32.totalorder %s245, 27
          %s247 = scalar_select %p246, %s245, 27
          %s248 = smul.addr %s247, 4
          %s249 = scalar_lea.vmem %s0, %s248
          %s250 = smul.u32 7, %s17
        $region44: #{tpu_custom_call.1} parent=39 // pred_fallthru
          _
      $region40: #{tpu_custom_call.1} parent=5 // pred_fallthru
        _
      %p251 = scmp.le.s32.totalorder 1, %s17
      %p252 = scmp.lt.s32.totalorder %s17, 5
      %p253 = pnand %p251, %p252
      %p254 = pneg %p253
      // Predicated region
      $region45: #{tpu_custom_call.1} parent=5 // pred_check
        _
      $region46: #{tpu_custom_call.1} parent=5 // pred_check_branch
        %256 = sbr.rel (%p253) target = $region48
      $region47: #{tpu_custom_call.1} parent=5 // pred_region
        %s257 = ssub.s32 %s17, 1
        // Predicated region
        $region49: #{tpu_custom_call.1} parent=47 // pred_check
          %p258 = pneg %p64
        $region50: #{tpu_custom_call.1} parent=47 // pred_check_branch
          %260 = sbr.rel (%p258) target = $region52
        $region51: #{tpu_custom_call.1} parent=47 // pred_region
          %261 = dma.done [#allocation3], 128
        $region52: #{tpu_custom_call.1} parent=47 // pred_fallthru
          _
        %s262 = smul.u32 7, %s22
        %p263 = scmp.lt.s32.totalorder %s262, 27
        %s264 = scalar_select %p263, %s262, 27
        %s265 = smul.addr %s264, 4
        %s266 = scalar_lea.vmem %s0, %s265
        %p267 = pneg %p43
        %p268 = pneg %p40
        %p269 = pneg %p64
        %p270 = pneg %p61
        %p271 = pneg %p85
        %p272 = pneg %p82
        %p273 = pneg %p106
        %p274 = pneg %p103
        %p275 = pneg %p127
        %p276 = pneg %p124
        %p277 = pneg %p148
        %p278 = pneg %p145
        %p279 = pneg %p169
        %p280 = pneg %p166
        %p281 = pneg %p195
        %p282 = pneg %p192
        %s283 = sand.u32 %s182, 1
        %s284 = scalar_lea.sflag [#allocation4], %s283
        %s285 = sand.u32 %s182, 1
        %s286 = smul.addr %s285, 56
        %s287 = scalar_lea.vmem [#allocation5], %s286
        %s288 = smul.u32 7, %s22
        %p289 = scmp.lt.s32.totalorder %s288, 27
        %s290 = scalar_select %p289, %s288, 27
        %s291 = smul.addr %s290, 4
        %s292 = scalar_lea.vmem %s0, %s291
        %s293 = smul.u32 7, %s22
        %s294 = smul.u32 7, %s22
        %v296 = vld [vmem:[%s292] sm:$0xf]
        %v297 = vld [vmem:[%s292 + $0x4] sm:$0xf]
        %v298 = vld [vmem:[%s292 + $0x8] sm:$0xf]
        %v299 = vld [vmem:[%s292 + $0xc] sm:$0xf]
        %v300 = vld [vmem:[%s292 + $0x10] sm:$0xf]
        %v301 = vld [vmem:[%s292 + $0x14] sm:$0xf]
        %v302 = vld [vmem:[%s292 + $0x18] sm:$0xf]
        %v303 = vld [vmem:[#allocation2] sm:$0xf]
        %v304 = vld [vmem:[#allocation2 + $0x4] sm:$0xf]
        %v305 = vld [vmem:[%s2] sm:$0x1]
        %v307 = vlaneseq
        %v308 = vshrl.u32 %v307, 7
        %v309 = vsub.s32 0, %v308
        %v310 = vrot.slane %v305, %v309
        %v319 = vunpack.c.l.b16 %v296
        %v320 = vunpack.c.l.b16 %v297
        %v321 = vunpack.c.l.b16 %v298
        %v322 = vunpack.c.l.b16 %v299
        %v323 = vunpack.c.l.b16 %v300
        %v324 = vunpack.c.l.b16 %v301
        %v325 = vunpack.c.l.b16 %v302
        %v326 = vpack.c.b16 %v320, %v319
        %v327 = vpack.c.b16 %v322, %v321
        %v328 = vpack.c.b16 %v324, %v323
        %v329 = vpack.c.b16 %v325, %v325
        %v332 = vunpack.c.l.b16 %v303
        %v333 = vunpack.c.l.b16 %v304
        %v334 = vpack.c.b16 %v333, %v332
        %vm336 = vcmask 130048
        %v338 = vsel %vm336, %v326, 0
        %v341 = vsel %vm336, %v327, 0
        %v344 = vsel %vm336, %v328, 0
        %v347 = vsel %vm336, %v329, 0
        %349 = vmatprep.subr.bf16.mxu0 0
        %350 = vmatpush1.bf16.msra.mxu0 0
        %351 = vmatprep.subr.bf16.mxu0 0
        %352 = vmatpush1.bf16.msra.mxu0 0
        %353 = vmatprep.subr.bf16.mxu0 0
        %354 = vmatpush1.bf16.msra.mxu0 0
        %355 = vmatprep.subr.bf16.mxu0 0
        %356 = vmatpush1.bf16.msra.mxu0 0
        %357 = vmatprep.subr.bf16.mxu0 0
        %358 = vmatpush1.bf16.msra.mxu0 0
        %359 = vmatprep.subr.bf16.mxu0 0
        %360 = vmatpush1.bf16.msra.mxu0 0
        %361 = vmatprep.subr.bf16.mxu0 0
        %362 = vmatpush1.bf16.msra.mxu0 0
        %363 = vmatprep.subr.bf16.mxu0 0
        %364 = vmatpush1.bf16.msra.mxu0 %v334
        %365 = vmatprep.subr.bf16.mxu0 0
        %366 = vmatpush2.bf16.msra.mxu0 0
        %367 = vmatprep.subr.bf16.mxu0 0
        %368 = vmatpush2.bf16.msra.mxu0 0
        %369 = vmatprep.subr.bf16.mxu0 0
        %370 = vmatpush2.bf16.msra.mxu0 0
        %371 = vmatprep.subr.bf16.mxu0 0
        %372 = vmatpush2.bf16.msra.mxu0 0
        %373 = vmatprep.subr.bf16.mxu0 0
        %374 = vmatpush2.bf16.msra.mxu0 0
        %375 = vmatprep.subr.bf16.mxu0 0
        %376 = vmatpush2.bf16.msra.mxu0 0
        %377 = vmatprep.subr.bf16.mxu0 0
        %378 = vmatpush2.bf16.msra.mxu0 0
        %379 = vmatprep.subr.bf16.mxu0 0
        %380 = vmatpush2.bf16.msra.mxu0 0
        %381 = vmatprep.mubr.bf16.mxu0 0
        %382 = vmatmul.mubr.bf16.gmra.mxu0 %v338
        %v383 = vpop.f32.mrf.mxu0
        %v384 = vadd.f32 %v310, %v383
        %v385 = vpop.f32.mrf.mxu0
        %v386 = vpop.f32.mrf.mxu0
        %v387 = vadd.f32 %v310, %v386
        %v388 = vpop.f32.mrf.mxu0
        %389 = vmatprep.mubr.bf16.mxu0 0
        %390 = vmatmul.mubr.bf16.gmra.mxu0 %v341
        %v391 = vpop.f32.mrf.mxu0
        %v392 = vadd.f32 %v310, %v391
        %v393 = vpop.f32.mrf.mxu0
        %v394 = vpop.f32.mrf.mxu0
        %v395 = vadd.f32 %v310, %v394
        %v396 = vpop.f32.mrf.mxu0
        %397 = vmatprep.mubr.bf16.mxu0 0
        %398 = vmatmul.mubr.bf16.gmra.mxu0 %v344
        %v399 = vpop.f32.mrf.mxu0
        %v400 = vadd.f32 %v310, %v399
        %v401 = vpop.f32.mrf.mxu0
        %v402 = vpop.f32.mrf.mxu0
        %v403 = vadd.f32 %v310, %v402
        %v404 = vpop.f32.mrf.mxu0
        %405 = vmatprep.mubr.bf16.mxu0 0
        %406 = vmatmul.mubr.bf16.gmra.mxu0 %v347
        %v407 = vpop.f32.mrf.mxu0
        %v408 = vadd.f32 %v310, %v407
        %v409 = vpop.f32.mrf.mxu0
        %v410 = vpop.f32.mrf.mxu0
        %v411 = vpop.f32.mrf.mxu0
        %412 = vdwg.mxu0
        %v413 = vpack.c.bf16 %v387, %v384
        %v414 = vpack.c.bf16 %v395, %v392
        %v415 = vpack.c.bf16 %v403, %v400
        %v416 = vpack.c.bf16 %v408, %v408
        %v417 = vld [vmem:[%s3] sm:$0xf]
        %v418 = vld [vmem:[%s3 + $0x4] sm:$0xf]
        %v419 = vld [vmem:[%s3 + $0x8] sm:$0xf]
        %v420 = vld [vmem:[%s3 + $0xc] sm:$0xf]
        %v421 = vld [vmem:[%s3 + $0x10] sm:$0xf]
        %v422 = vld [vmem:[%s3 + $0x14] sm:$0xf]
        %v423 = vld [vmem:[%s3 + $0x18] sm:$0xf]
        %v424 = vld [vmem:[%s3 + $0x1c] sm:$0xf]
        %v425 = vld [vmem:[%s3 + $0x20] sm:$0xf]
        %v426 = vld [vmem:[%s3 + $0x24] sm:$0xf]
        %v427 = vld [vmem:[%s3 + $0x28] sm:$0xf]
        %v428 = vld [vmem:[%s3 + $0x2c] sm:$0xf]
        %v429 = vld [vmem:[%s3 + $0x30] sm:$0xf]
        %v430 = vld [vmem:[%s3 + $0x34] sm:$0xf]
        %v431 = vld [vmem:[%s3 + $0x38] sm:$0xf]
        %v432 = vld [vmem:[%s3 + $0x3c] sm:$0xf]
        %v433 = vld [vmem:[%s4] sm:$0x1]
        %v435 = vlaneseq
        %v436 = vshrl.u32 %v435, 7
        %v437 = vsub.s32 0, %v436
        %v438 = vrot.slane %v433, %v437
        %v456 = vunpack.c.l.b16 %v417
        %v457 = vunpack.c.l.b16 %v418
        %v458 = vunpack.c.l.b16 %v419
        %v459 = vunpack.c.l.b16 %v420
        %v460 = vunpack.c.l.b16 %v421
        %v461 = vunpack.c.l.b16 %v422
        %v462 = vunpack.c.l.b16 %v423
        %v463 = vunpack.c.l.b16 %v424
        %v464 = vunpack.c.l.b16 %v425
        %v465 = vunpack.c.l.b16 %v426
        %v466 = vunpack.c.l.b16 %v427
        %v467 = vunpack.c.l.b16 %v428
        %v468 = vunpack.c.l.b16 %v429
        %v469 = vunpack.c.l.b16 %v430
        %v470 = vunpack.c.l.b16 %v431
        %v471 = vunpack.c.l.b16 %v432
        %v472 = vpack.c.b16 %v457, %v456
        %v473 = vpack.c.b16 %v459, %v458
        %v474 = vpack.c.b16 %v461, %v460
        %v475 = vpack.c.b16 %v463, %v462
        %v476 = vpack.c.b16 %v465, %v464
        %v477 = vpack.c.b16 %v467, %v466
        %v478 = vpack.c.b16 %v469, %v468
        %v479 = vpack.c.b16 %v471, %v470
        %488 = vmatprep.subr.bf16.mxu0 0
        %489 = vmatpush1.bf16.msra.mxu0 %v479
        %490 = vmatprep.subr.bf16.mxu0 0
        %491 = vmatpush1.bf16.msra.mxu0 %v478
        %492 = vmatprep.subr.bf16.mxu0 0
        %493 = vmatpush1.bf16.msra.mxu0 %v477
        %494 = vmatprep.subr.bf16.mxu0 0
        %495 = vmatpush1.bf16.msra.mxu0 %v476
        %496 = vmatprep.subr.bf16.mxu0 0
        %497 = vmatpush1.bf16.msra.mxu0 %v475
        %498 = vmatprep.subr.bf16.mxu0 0
        %499 = vmatpush1.bf16.msra.mxu0 %v474
        %500 = vmatprep.subr.bf16.mxu0 0
        %501 = vmatpush1.bf16.msra.mxu0 %v473
        %502 = vmatprep.subr.bf16.mxu0 0
        %503 = vmatpush1.bf16.msra.mxu0 %v472
        %504 = vmatprep.subr.bf16.mxu0 0
        %505 = vmatpush2.bf16.msra.mxu0 0
        %506 = vmatprep.subr.bf16.mxu0 0
        %507 = vmatpush2.bf16.msra.mxu0 0
        %508 = vmatprep.subr.bf16.mxu0 0
        %509 = vmatpush2.bf16.msra.mxu0 0
        %510 = vmatprep.subr.bf16.mxu0 0
        %511 = vmatpush2.bf16.msra.mxu0 0
        %512 = vmatprep.subr.bf16.mxu0 0
        %513 = vmatpush2.bf16.msra.mxu0 0
        %514 = vmatprep.subr.bf16.mxu0 0
        %515 = vmatpush2.bf16.msra.mxu0 0
        %516 = vmatprep.subr.bf16.mxu0 0
        %517 = vmatpush2.bf16.msra.mxu0 0
        %518 = vmatprep.subr.bf16.mxu0 0
        %519 = vmatpush2.bf16.msra.mxu0 0
        %520 = vmatprep.mubr.bf16.mxu0 0
        %521 = vmatmul.mubr.bf16.gmra.mxu0 %v413
        %v522 = vpop.f32.mrf.mxu0
        %v523 = vadd.f32 %v438, %v522
        %v524 = vpop.f32.mrf.mxu0
        %v525 = vpop.f32.mrf.mxu0
        %v526 = vadd.f32 %v438, %v525
        %v527 = vpop.f32.mrf.mxu0
        %528 = vmatprep.mubr.bf16.mxu0 0
        %529 = vmatmul.mubr.bf16.gmra.mxu0 %v414
        %v530 = vpop.f32.mrf.mxu0
        %v531 = vadd.f32 %v438, %v530
        %v532 = vpop.f32.mrf.mxu0
        %v533 = vpop.f32.mrf.mxu0
        %v534 = vadd.f32 %v438, %v533
        %v535 = vpop.f32.mrf.mxu0
        %536 = vmatprep.mubr.bf16.mxu0 0
        %537 = vmatmul.mubr.bf16.gmra.mxu0 %v415
        %v538 = vpop.f32.mrf.mxu0
        %v539 = vadd.f32 %v438, %v538
        %v540 = vpop.f32.mrf.mxu0
        %v541 = vpop.f32.mrf.mxu0
        %v542 = vadd.f32 %v438, %v541
        %v543 = vpop.f32.mrf.mxu0
        %544 = vmatprep.mubr.bf16.mxu0 0
        %545 = vmatmul.mubr.bf16.gmra.mxu0 %v416
        %v546 = vpop.f32.mrf.mxu0
        %v547 = vadd.f32 %v438, %v546
        %v548 = vpop.f32.mrf.mxu0
        %v549 = vpop.f32.mrf.mxu0
        %v550 = vpop.f32.mrf.mxu0
        %551 = vdwg.mxu0
        %v552 = vmax.f32 %v523, 0.0
        %v553 = vmax.f32 %v526, 0.0
        %v554 = vmax.f32 %v531, 0.0
        %v555 = vmax.f32 %v534, 0.0
        %v556 = vmax.f32 %v539, 0.0
        %v557 = vmax.f32 %v542, 0.0
        %v558 = vmax.f32 %v547, 0.0
        %v559 = vpack.c.bf16 %v553, %v552
        %v560 = vpack.c.bf16 %v555, %v554
        %v561 = vpack.c.bf16 %v557, %v556
        %v562 = vpack.c.bf16 %v558, %v558
        %v563 = vld [vmem:[%s5] sm:$0xf]
        %v564 = vld [vmem:[%s5 + $0x4] sm:$0xf]
        %v565 = vld [vmem:[%s5 + $0x8] sm:$0xf]
        %v566 = vld [vmem:[%s5 + $0xc] sm:$0xf]
        %v567 = vld [vmem:[%s5 + $0x10] sm:$0xf]
        %v568 = vld [vmem:[%s5 + $0x14] sm:$0xf]
        %v569 = vld [vmem:[%s5 + $0x18] sm:$0xf]
        %v570 = vld [vmem:[%s5 + $0x1c] sm:$0xf]
        %v571 = vld [vmem:[%s5 + $0x20] sm:$0xf]
        %v572 = vld [vmem:[%s5 + $0x24] sm:$0xf]
        %v573 = vld [vmem:[%s5 + $0x28] sm:$0xf]
        %v574 = vld [vmem:[%s5 + $0x2c] sm:$0xf]
        %v575 = vld [vmem:[%s5 + $0x30] sm:$0xf]
        %v576 = vld [vmem:[%s5 + $0x34] sm:$0xf]
        %v577 = vld [vmem:[%s5 + $0x38] sm:$0xf]
        %v578 = vld [vmem:[%s5 + $0x3c] sm:$0xf]
        %v579 = vld [vmem:[%s6] sm:$0x1]
        %v581 = vlaneseq
        %v582 = vshrl.u32 %v581, 7
        %v583 = vsub.s32 0, %v582
        %v584 = vrot.slane %v579, %v583
        %v602 = vunpack.c.l.b16 %v563
        %v603 = vunpack.c.l.b16 %v564
        %v604 = vunpack.c.l.b16 %v565
        %v605 = vunpack.c.l.b16 %v566
        %v606 = vunpack.c.l.b16 %v567
        %v607 = vunpack.c.l.b16 %v568
        %v608 = vunpack.c.l.b16 %v569
        %v609 = vunpack.c.l.b16 %v570
        %v610 = vunpack.c.l.b16 %v571
        %v611 = vunpack.c.l.b16 %v572
        %v612 = vunpack.c.l.b16 %v573
        %v613 = vunpack.c.l.b16 %v574
        %v614 = vunpack.c.l.b16 %v575
        %v615 = vunpack.c.l.b16 %v576
        %v616 = vunpack.c.l.b16 %v577
        %v617 = vunpack.c.l.b16 %v578
        %v618 = vpack.c.b16 %v603, %v602
        %v619 = vpack.c.b16 %v605, %v604
        %v620 = vpack.c.b16 %v607, %v606
        %v621 = vpack.c.b16 %v609, %v608
        %v622 = vpack.c.b16 %v611, %v610
        %v623 = vpack.c.b16 %v613, %v612
        %v624 = vpack.c.b16 %v615, %v614
        %v625 = vpack.c.b16 %v617, %v616
        %634 = vmatprep.subr.bf16.mxu0 0
        %635 = vmatpush1.bf16.msra.mxu0 %v625
        %636 = vmatprep.subr.bf16.mxu0 0
        %637 = vmatpush1.bf16.msra.mxu0 %v624
        %638 = vmatprep.subr.bf16.mxu0 0
        %639 = vmatpush1.bf16.msra.mxu0 %v623
        %640 = vmatprep.subr.bf16.mxu0 0
        %641 = vmatpush1.bf16.msra.mxu0 %v622
        %642 = vmatprep.subr.bf16.mxu0 0
        %643 = vmatpush1.bf16.msra.mxu0 %v621
        %644 = vmatprep.subr.bf16.mxu0 0
        %645 = vmatpush1.bf16.msra.mxu0 %v620
        %646 = vmatprep.subr.bf16.mxu0 0
        %647 = vmatpush1.bf16.msra.mxu0 %v619
        %648 = vmatprep.subr.bf16.mxu0 0
        %649 = vmatpush1.bf16.msra.mxu0 %v618
        %650 = vmatprep.subr.bf16.mxu0 0
        %651 = vmatpush2.bf16.msra.mxu0 0
        %652 = vmatprep.subr.bf16.mxu0 0
        %653 = vmatpush2.bf16.msra.mxu0 0
        %654 = vmatprep.subr.bf16.mxu0 0
        %655 = vmatpush2.bf16.msra.mxu0 0
        %656 = vmatprep.subr.bf16.mxu0 0
        %657 = vmatpush2.bf16.msra.mxu0 0
        %658 = vmatprep.subr.bf16.mxu0 0
        %659 = vmatpush2.bf16.msra.mxu0 0
        %660 = vmatprep.subr.bf16.mxu0 0
        %661 = vmatpush2.bf16.msra.mxu0 0
        %662 = vmatprep.subr.bf16.mxu0 0
        %663 = vmatpush2.bf16.msra.mxu0 0
        %664 = vmatprep.subr.bf16.mxu0 0
        %665 = vmatpush2.bf16.msra.mxu0 0
        %666 = vmatprep.mubr.bf16.mxu0 0
        %667 = vmatmul.mubr.bf16.gmra.mxu0 %v559
        %v668 = vpop.f32.mrf.mxu0
        %v669 = vadd.f32 %v584, %v668
        %v670 = vpop.f32.mrf.mxu0
        %v671 = vpop.f32.mrf.mxu0
        %v672 = vadd.f32 %v584, %v671
        %v673 = vpop.f32.mrf.mxu0
        %674 = vmatprep.mubr.bf16.mxu0 0
        %675 = vmatmul.mubr.bf16.gmra.mxu0 %v560
        %v676 = vpop.f32.mrf.mxu0
        %v677 = vadd.f32 %v584, %v676
        %v678 = vpop.f32.mrf.mxu0
        %v679 = vpop.f32.mrf.mxu0
        %v680 = vadd.f32 %v584, %v679
        %v681 = vpop.f32.mrf.mxu0
        %682 = vmatprep.mubr.bf16.mxu0 0
        %683 = vmatmul.mubr.bf16.gmra.mxu0 %v561
        %v684 = vpop.f32.mrf.mxu0
        %v685 = vadd.f32 %v584, %v684
        %v686 = vpop.f32.mrf.mxu0
        %v687 = vpop.f32.mrf.mxu0
        %v688 = vadd.f32 %v584, %v687
        %v689 = vpop.f32.mrf.mxu0
        %690 = vmatprep.mubr.bf16.mxu0 0
        %691 = vmatmul.mubr.bf16.gmra.mxu0 %v562
        %v692 = vpop.f32.mrf.mxu0
        %v693 = vadd.f32 %v584, %v692
        %v694 = vpop.f32.mrf.mxu0
        %v695 = vpop.f32.mrf.mxu0
        %v696 = vpop.f32.mrf.mxu0
        %697 = vdwg.mxu0
        %698 = vmax.xlane.f32.xlu0 %v669
        %v699 = vpop.xlane.xlu0 %698
        %700 = vmax.xlane.f32.xlu0 %v672
        %v701 = vpop.xlane.xlu0 %700
        %702 = vmax.xlane.f32.xlu0 %v677
        %v703 = vpop.xlane.xlu0 %702
        %704 = vmax.xlane.f32.xlu0 %v680
        %v705 = vpop.xlane.xlu0 %704
        %706 = vmax.xlane.f32.xlu0 %v685
        %v707 = vpop.xlane.xlu0 %706
        %708 = vmax.xlane.f32.xlu0 %v688
        %v709 = vpop.xlane.xlu0 %708
        %710 = vmax.xlane.f32.xlu0 %v693
        %v711 = vpop.xlane.xlu0 %710
        %v712 = vsub.f32 %v669, %v699
        %v713 = vsub.f32 %v672, %v701
        %v714 = vsub.f32 %v677, %v703
        %v715 = vsub.f32 %v680, %v705
        %v716 = vsub.f32 %v685, %v707
        %v717 = vsub.f32 %v688, %v709
        %v718 = vsub.f32 %v693, %v711
        %v719 = vmul.f32 %v712, 1.442695
        %v720 = vpow.pop %v719
        %v721 = vmul.f32 %v713, 1.442695
        %v722 = vpow.pop %v721
        %v723 = vmul.f32 %v714, 1.442695
        %v724 = vpow.pop %v723
        %v725 = vmul.f32 %v715, 1.442695
        %v726 = vpow.pop %v725
        %v727 = vmul.f32 %v716, 1.442695
        %v728 = vpow.pop %v727
        %v729 = vmul.f32 %v717, 1.442695
        %v730 = vpow.pop %v729
        %v731 = vmul.f32 %v718, 1.442695
        %v732 = vpow.pop %v731
        %733 = vadd.xlane.f32.xlu0 %v720
        %v734 = vpop.xlane.xlu0 %733
        %735 = vadd.xlane.f32.xlu0 %v722
        %v736 = vpop.xlane.xlu0 %735
        %737 = vadd.xlane.f32.xlu0 %v724
        %v738 = vpop.xlane.xlu0 %737
        %739 = vadd.xlane.f32.xlu0 %v726
        %v740 = vpop.xlane.xlu0 %739
        %741 = vadd.xlane.f32.xlu0 %v728
        %v742 = vpop.xlane.xlu0 %741
        %743 = vadd.xlane.f32.xlu0 %v730
        %v744 = vpop.xlane.xlu0 %743
        %745 = vadd.xlane.f32.xlu0 %v732
        %v746 = vpop.xlane.xlu0 %745
        %v747 = vlog2.pop %v734
        %v748 = vmul.f32 %v747, 0.6931472
        %v749 = vlog2.pop %v736
        %v750 = vmul.f32 %v749, 0.6931472
        %v751 = vlog2.pop %v738
        %v752 = vmul.f32 %v751, 0.6931472
        %v753 = vlog2.pop %v740
        %v754 = vmul.f32 %v753, 0.6931472
        %v755 = vlog2.pop %v742
        %v756 = vmul.f32 %v755, 0.6931472
        %v757 = vlog2.pop %v744
        %v758 = vmul.f32 %v757, 0.6931472
        %v759 = vlog2.pop %v746
        %v760 = vmul.f32 %v759, 0.6931472
        %v761 = vsub.f32 %v712, %v748
        %v762 = vsub.f32 %v713, %v750
        %v763 = vsub.f32 %v714, %v752
        %v764 = vsub.f32 %v715, %v754
        %v765 = vsub.f32 %v716, %v756
        %v766 = vsub.f32 %v717, %v758
        %v767 = vsub.f32 %v718, %v760
        %768 = vst [vmem:[%s287] sm:$0xff] %v761
        %769 = vst [vmem:[%s287 + $0x8] sm:$0xff] %v762
        %770 = vst [vmem:[%s287 + $0x10] sm:$0xff] %v763
        %771 = vst [vmem:[%s287 + $0x18] sm:$0xff] %v764
        %772 = vst [vmem:[%s287 + $0x20] sm:$0xff] %v765
        %773 = vst [vmem:[%s287 + $0x28] sm:$0xff] %v766
        %774 = vst [vmem:[%s287 + $0x30] sm:$0xff] %v767
        %s775 = sand.u32 %s182, 1
        %s776 = scalar_lea.sflag [#allocation4], %s775
        %s777 = sand.u32 %s182, 1
        %s778 = smul.addr %s777, 56
        %s779 = scalar_lea.vmem [#allocation5], %s778
        // Predicated region
        $region53: #{tpu_custom_call.1} parent=47 // pred_check
          %p780 = pneg %p192
        $region54: #{tpu_custom_call.1} parent=47 // pred_check_branch
          %782 = sbr.rel (%p780) target = $region56
        $region55: #{tpu_custom_call.1} parent=47 // pred_region
          %s783 = smul.u32 7, %s22
          %s785 = ssub.s32 896, 896
          %786 = vsyncadd %s776, %s785
          %s787 = smul.addr %s783, 128
          %s788 = scalar_lea.hbm %s7, %s787
          %s789 = sshll.u32 %s779, 4
          %s790 = int_to_ptr.vmem [resolvable:$true] %s789
          %795 = dma.vmem_to_hbm [thread:$0]  %s790, 896, %s788, %s776, 128, 128, 8
        $region56: #{tpu_custom_call.1} parent=47 // pred_fallthru
          _
      $region48: #{tpu_custom_call.1} parent=5 // pred_fallthru
        _
      %p796 = scmp.le.s32.totalorder 2, %s17
      // Predicated region
      $region57: #{tpu_custom_call.1} parent=5 // pred_check
        %p797 = pneg %p796
      $region58: #{tpu_custom_call.1} parent=5 // pred_check_branch
        %799 = sbr.rel (%p797) target = $region60
      $region59: #{tpu_custom_call.1} parent=5 // pred_region
        %s800 = ssub.s32 %s17, 2
        // Predicated region
        $region61: #{tpu_custom_call.1} parent=59 // pred_check
          %p801 = pneg %p198
        $region62: #{tpu_custom_call.1} parent=59 // pred_check_branch
          %803 = sbr.rel (%p801) target = $region64
        $region63: #{tpu_custom_call.1} parent=59 // pred_region
          %s804 = sand.u32 %s183, 1
          %s805 = scalar_lea.sflag [#allocation4], %s804
          %s806 = sand.u32 %s183, 1
          %s807 = smul.addr %s806, 56
          %s808 = scalar_lea.vmem [#allocation5], %s807
          %809 = dma.done %s805, 896
        $region64: #{tpu_custom_call.1} parent=59 // pred_fallthru
          _
      $region60: #{tpu_custom_call.1} parent=5 // pred_fallthru
        _
    $region6: #{tpu_custom_call.1} parent=1 // loop_footer
      %s21 = sadd.s32 1, %s17
    $region7: #{tpu_custom_call.1} parent=1 // loop_footer_branch
      %16 = sbr.rel target = $region3
    $region8: #{tpu_custom_call.1} parent=1 // loop_exit
      _
    %810 = vsyncpa [#allocation3], 1
    %s811 = scalar_lea.sflag [#allocation3], 1
    %812 = vsyncpa %s811, 1
    %813 = vsyncpa [#allocation4], 1
    %s814 = scalar_lea.sflag [#allocation4], 1
    %815 = vsyncpa %s814, 1

// kernel: tpu_custom_call.1
$region0: #{tpu_custom_call.1}
  #allocation0 [shape = 'u32[]', space=smem, size = 0x4, offset = 0x4, fixed_abs, tag = 'smem constant byte address 0x4 - core index']
  #allocation1 [shape = 'u32[144,128]{1,0:T(1,128)}', space=vmem, size = 0x12000, scoped, tag = 'internal scratch']
  %s0 = inlined_call_operand.vmem [shape: bf16[224,16], index: 0, kind: input, shape index: {}]
  %s1 = inlined_call_operand.hbm [shape: bf16[16,128], index: 1, kind: input, shape index: {}]
  %s2 = inlined_call_operand.vmem [shape: f32[1,128], index: 2, kind: input, shape index: {}]
  %s3 = inlined_call_operand.vmem [shape: bf16[128,128], index: 3, kind: input, shape index: {}]
  %s4 = inlined_call_operand.vmem [shape: f32[1,128], index: 4, kind: input, shape index: {}]
  %s5 = inlined_call_operand.vmem [shape: bf16[128,128], index: 5, kind: input, shape index: {}]
  %s6 = inlined_call_operand.vmem [shape: f32[1,128], index: 6, kind: input, shape index: {}]
  %s7 = inlined_call_operand.hbm [shape: f32[224,128], index: 7, kind: output, shape index: {}]
  %s8 = sld [smem:[#allocation0]]
  $region65: #{tpu_custom_call.1} parent=0
    _
  %s10 = ssub.s32 1, %s8
  %s11 = scalar_select 0, %s10, %s8
  $region1: #{tpu_custom_call.1} parent=0
    #allocation2 [shape = 'u8[4096]{0}', space=vmem, size = 0x1000, scoped, tag = 'input window, operand 1, single buffered']
    #allocation3 [shape = 's32[2]{0}', space=sflag, size = 0x8, scoped, tag = 'scoped memory for tpu_custom_call.1']
    #allocation4 [shape = 's32[2]{0}', space=sflag, size = 0x8, scoped, tag = 'scoped memory for tpu_custom_call.1']
    #allocation5 [shape = 'u8[57344]{0}', space=vmem, size = 0xe000, scoped, tag = 'output window, operand 0']
    %12 = vsyncpa [#allocation3], 0
    %13 = vsyncpa [#allocation4], 0
    %s14 = scalar_lea.sflag [#allocation4], 1
    %15 = vsyncpa %s14, 0
    loop: start=0, step=1, limit=6
    $region2: #{tpu_custom_call.1} parent=1 // loop_pre_header
      _
    $region3: #{tpu_custom_call.1} parent=1 // loop_header
      %s17 = sphi 0, %s21
      %p18 = scmp.ge.s32.totalorder %s17, 6
      %s27 = sphi 0, %s29
      %s30 = sphi 0, %s27
      %s31 = sphi 0, %s30
      %s47 = sphi 0, %s31
      %s51 = sphi 0, %s51
      %s53 = sphi 0, %s51
      %s54 = sphi 0, %s53
      %s68 = sphi 0, %s54
      %s72 = sphi 0, %s72
      %s74 = sphi 0, %s72
      %s75 = sphi 0, %s74
      %s89 = sphi 0, %s75
      %s93 = sphi 0, %s93
      %s95 = sphi 0, %s93
      %s96 = sphi 0, %s95
      %s110 = sphi 0, %s96
      %s114 = sphi 0, %s114
      %s116 = sphi 0, %s114
      %s117 = sphi 0, %s116
      %s131 = sphi 0, %s117
      %s135 = sphi 0, %s135
      %s137 = sphi 0, %s135
      %s138 = sphi 0, %s137
      %s152 = sphi 0, %s138
      %s156 = sphi 0, %s156
      %s158 = sphi 0, %s156
      %s159 = sphi 0, %s158
      %s173 = sphi 0, %s159
      %s179 = sphi 0, %s181
      %s182 = sphi 0, %s179
      %s183 = sphi 0, %s182
      %s199 = sphi 0, %s183
    $region4: #{tpu_custom_call.1} parent=1 // loop_header_branch
      %20 = sbr.rel (%p18) target = $region8
    $region5: #{tpu_custom_call.1} parent=1 // loop_body
      %s22 = ssub.s32 %s17, 1
      %s23 = ssub.s32 %s17, 2
      %s24 = sadd.s32 %s17, 1
      %s25 = ssub.s32 %s17, %s24
      %p26 = scmp.eq.s32.totalorder %s25, 0
      %s28 = sadd.s32 %s27, 1
      %s29 = scalar_select %p26, %s27, %s28
      %p32 = pneg %p26
      %p33 = scmp.eq.s32.totalorder %s17, 3
      %p34 = por %p32, %p33
      %p35 = scmp.ne.s32.totalorder %s27, %s30
      %p36 = scmp.eq.s32.totalorder %s17, 0
      %p37 = por %p35, %p36
      %p38 = scmp.ne.s32.totalorder %s27, %s30
      %p39 = scmp.eq.s32.totalorder %s22, 3
      %p40 = por %p38, %p39
      %p41 = scmp.ne.s32.totalorder %s30, %s31
      %p42 = scmp.eq.s32.totalorder %s22, 0
      %p43 = por %p41, %p42
      %p44 = scmp.ne.s32.totalorder %s30, %s31
      %p45 = scmp.eq.s32.totalorder %s23, 3
      %p46 = por %p44, %p45
      %p48 = scmp.ne.s32.totalorder %s31, %s47
      %p49 = scmp.eq.s32.totalorder %s23, 0
      %p50 = por %p48, %p49
      %s52 = sadd.s32 %s51, 1
      %p55 = scmp.eq.s32.totalorder %s17, 3
      %p56 = scmp.ne.s32.totalorder %s51, %s53
      %p57 = scmp.eq.s32.totalorder %s17, 0
      %p58 = por %p56, %p57
      %p59 = scmp.ne.s32.totalorder %s51, %s53
      %p60 = scmp.eq.s32.totalorder %s22, 3
      %p61 = por %p59, %p60
      %p62 = scmp.ne.s32.totalorder %s53, %s54
      %p63 = scmp.eq.s32.totalorder %s22, 0
      %p64 = por %p62, %p63
      %p65 = scmp.ne.s32.totalorder %s53, %s54
      %p66 = scmp.eq.s32.totalorder %s23, 3
      %p67 = por %p65, %p66
      %p69 = scmp.ne.s32.totalorder %s54, %s68
      %p70 = scmp.eq.s32.totalorder %s23, 0
      %p71 = por %p69, %p70
      %s73 = sadd.s32 %s72, 1
      %p76 = scmp.eq.s32.totalorder %s17, 3
      %p77 = scmp.ne.s32.totalorder %s72, %s74
      %p78 = scmp.eq.s32.totalorder %s17, 0
      %p79 = por %p77, %p78
      %p80 = scmp.ne.s32.totalorder %s72, %s74
      %p81 = scmp.eq.s32.totalorder %s22, 3
      %p82 = por %p80, %p81
      %p83 = scmp.ne.s32.totalorder %s74, %s75
      %p84 = scmp.eq.s32.totalorder %s22, 0
      %p85 = por %p83, %p84
      %p86 = scmp.ne.s32.totalorder %s74, %s75
      %p87 = scmp.eq.s32.totalorder %s23, 3
      %p88 = por %p86, %p87
      %p90 = scmp.ne.s32.totalorder %s75, %s89
      %p91 = scmp.eq.s32.totalorder %s23, 0
      %p92 = por %p90, %p91
      %s94 = sadd.s32 %s93, 1
      %p97 = scmp.eq.s32.totalorder %s17, 3
      %p98 = scmp.ne.s32.totalorder %s93, %s95
      %p99 = scmp.eq.s32.totalorder %s17, 0
      %p100 = por %p98, %p99
      %p101 = scmp.ne.s32.totalorder %s93, %s95
      %p102 = scmp.eq.s32.totalorder %s22, 3
      %p103 = por %p101, %p102
      %p104 = scmp.ne.s32.totalorder %s95, %s96
      %p105 = scmp.eq.s32.totalorder %s22, 0
      %p106 = por %p104, %p105
      %p107 = scmp.ne.s32.totalorder %s95, %s96
      %p108 = scmp.eq.s32.totalorder %s23, 3
      %p109 = por %p107, %p108
      %p111 = scmp.ne.s32.totalorder %s96, %s110
      %p112 = scmp.eq.s32.totalorder %s23, 0
      %p113 = por %p111, %p112
      %s115 = sadd.s32 %s114, 1
      %p118 = scmp.eq.s32.totalorder %s17, 3
      %p119 = scmp.ne.s32.totalorder %s114, %s116
      %p120 = scmp.eq.s32.totalorder %s17, 0
      %p121 = por %p119, %p120
      %p122 = scmp.ne.s32.totalorder %s114, %s116
      %p123 = scmp.eq.s32.totalorder %s22, 3
      %p124 = por %p122, %p123
      %p125 = scmp.ne.s32.totalorder %s116, %s117
      %p126 = scmp.eq.s32.totalorder %s22, 0
      %p127 = por %p125, %p126
      %p128 = scmp.ne.s32.totalorder %s116, %s117
      %p129 = scmp.eq.s32.totalorder %s23, 3
      %p130 = por %p128, %p129
      %p132 = scmp.ne.s32.totalorder %s117, %s131
      %p133 = scmp.eq.s32.totalorder %s23, 0
      %p134 = por %p132, %p133
      %s136 = sadd.s32 %s135, 1
      %p139 = scmp.eq.s32.totalorder %s17, 3
      %p140 = scmp.ne.s32.totalorder %s135, %s137
      %p141 = scmp.eq.s32.totalorder %s17, 0
      %p142 = por %p140, %p141
      %p143 = scmp.ne.s32.totalorder %s135, %s137
      %p144 = scmp.eq.s32.totalorder %s22, 3
      %p145 = por %p143, %p144
      %p146 = scmp.ne.s32.totalorder %s137, %s138
      %p147 = scmp.eq.s32.totalorder %s22, 0
      %p148 = por %p146, %p147
      %p149 = scmp.ne.s32.totalorder %s137, %s138
      %p150 = scmp.eq.s32.totalorder %s23, 3
      %p151 = por %p149, %p150
      %p153 = scmp.ne.s32.totalorder %s138, %s152
      %p154 = scmp.eq.s32.totalorder %s23, 0
      %p155 = por %p153, %p154
      %s157 = sadd.s32 %s156, 1
      %p160 = scmp.eq.s32.totalorder %s17, 3
      %p161 = scmp.ne.s32.totalorder %s156, %s158
      %p162 = scmp.eq.s32.totalorder %s17, 0
      %p163 = por %p161, %p162
      %p164 = scmp.ne.s32.totalorder %s156, %s158
      %p165 = scmp.eq.s32.totalorder %s22, 3
      %p166 = por %p164, %p165
      %p167 = scmp.ne.s32.totalorder %s158, %s159
      %p168 = scmp.eq.s32.totalorder %s22, 0
      %p169 = por %p167, %p168
      %p170 = scmp.ne.s32.totalorder %s158, %s159
      %p171 = scmp.eq.s32.totalorder %s23, 3
      %p172 = por %p170, %p171
      %p174 = scmp.ne.s32.totalorder %s159, %s173
      %p175 = scmp.eq.s32.totalorder %s23, 0
      %p176 = por %p174, %p175
      %s177 = ssub.s32 %s17, %s24
      %p178 = scmp.eq.s32.totalorder %s177, 0
      %s180 = sadd.s32 %s179, 1
      %s181 = scalar_select %p178, %s179, %s180
      %p184 = pneg %p178
      %p185 = scmp.eq.s32.totalorder %s17, 3
      %p186 = por %p184, %p185
      %p187 = scmp.ne.s32.totalorder %s179, %s182
      %p188 = scmp.eq.s32.totalorder %s17, 0
      %p189 = por %p187, %p188
      %p190 = scmp.ne.s32.totalorder %s179, %s182
      %p191 = scmp.eq.s32.totalorder %s22, 3
      %p192 = por %p190, %p191
      %p193 = scmp.ne.s32.totalorder %s182, %s183
      %p194 = scmp.eq.s32.totalorder %s22, 0
      %p195 = por %p193, %p194
      %p196 = scmp.ne.s32.totalorder %s182, %s183
      %p197 = scmp.eq.s32.totalorder %s23, 3
      %p198 = por %p196, %p197
      %p200 = scmp.ne.s32.totalorder %s183, %s199
      %p201 = scmp.eq.s32.totalorder %s23, 0
      %p202 = por %p200, %p201
      %p203 = scmp.le.s32.totalorder 1, %s17
      %p204 = scmp.lt.s32.totalorder %s17, 5
      %p205 = pnand %p203, %p204
      %p206 = pneg %p205
      // Predicated region
      $region9: #{tpu_custom_call.1} parent=5 // pred_check
        _
      $region10: #{tpu_custom_call.1} parent=5 // pred_check_branch
        %208 = sbr.rel (%p205) target = $region12
      $region11: #{tpu_custom_call.1} parent=5 // pred_region
        %s209 = ssub.s32 %s17, 1
        // Predicated region
        $region13: #{tpu_custom_call.1} parent=11 // pred_check
          %p210 = pneg %p64
        $region14: #{tpu_custom_call.1} parent=11 // pred_check_branch
          %212 = sbr.rel (%p210) target = $region16
        $region15: #{tpu_custom_call.1} parent=11 // pred_region
          %s214 = ssub.s32 128, 128
          %215 = vsyncadd [#allocation3], %s214
          %s216 = sshll.u32 [#allocation2], 4
          %s217 = int_to_ptr.vmem [resolvable:$true] %s216
          %222 = dma.hbm_to_vmem [thread:$0]  %s1, 128, %s217, [#allocation3], 64, 64, 4
        $region16: #{tpu_custom_call.1} parent=11 // pred_fallthru
          _
        // Predicated region
        $region17: #{tpu_custom_call.1} parent=11 // pred_check
          %p223 = pneg %p85
        $region18: #{tpu_custom_call.1} parent=11 // pred_check_branch
          %225 = sbr.rel (%p223) target = $region20
        $region19: #{tpu_custom_call.1} parent=11 // pred_region
          _
        $region20: #{tpu_custom_call.1} parent=11 // pred_fallthru
          _
        // Predicated region
        $region21: #{tpu_custom_call.1} parent=11 // pred_check
          %p226 = pneg %p106
        $region22: #{tpu_custom_call.1} parent=11 // pred_check_branch
          %228 = sbr.rel (%p226) target = $region24
        $region23: #{tpu_custom_call.1} parent=11 // pred_region
          _
        $region24: #{tpu_custom_call.1} parent=11 // pred_fallthru
          _
        // Predicated region
        $region25: #{tpu_custom_call.1} parent=11 // pred_check
          %p229 = pneg %p127
        $region26: #{tpu_custom_call.1} parent=11 // pred_check_branch
          %231 = sbr.rel (%p229) target = $region28
        $region27: #{tpu_custom_call.1} parent=11 // pred_region
          _
        $region28: #{tpu_custom_call.1} parent=11 // pred_fallthru
          _
        // Predicated region
        $region29: #{tpu_custom_call.1} parent=11 // pred_check
          %p232 = pneg %p148
        $region30: #{tpu_custom_call.1} parent=11 // pred_check_branch
          %234 = sbr.rel (%p232) target = $region32
        $region31: #{tpu_custom_call.1} parent=11 // pred_region
          _
        $region32: #{tpu_custom_call.1} parent=11 // pred_fallthru
          _
        // Predicated region
        $region33: #{tpu_custom_call.1} parent=11 // pred_check
          %p235 = pneg %p169
        $region34: #{tpu_custom_call.1} parent=11 // pred_check_branch
          %237 = sbr.rel (%p235) target = $region36
        $region35: #{tpu_custom_call.1} parent=11 // pred_region
          _
        $region36: #{tpu_custom_call.1} parent=11 // pred_fallthru
          _
      $region12: #{tpu_custom_call.1} parent=5 // pred_fallthru
        _
      %p238 = scmp.lt.s32.totalorder %s17, 4
      // Predicated region
      $region37: #{tpu_custom_call.1} parent=5 // pred_check
        %p239 = pneg %p238
      $region38: #{tpu_custom_call.1} parent=5 // pred_check_branch
        %241 = sbr.rel (%p239) target = $region40
      $region39: #{tpu_custom_call.1} parent=5 // pred_region
        // Predicated region
        $region41: #{tpu_custom_call.1} parent=39 // pred_check
          %p242 = pneg %p37
        $region42: #{tpu_custom_call.1} parent=39 // pred_check_branch
          %244 = sbr.rel (%p242) target = $region44
        $region43: #{tpu_custom_call.1} parent=39 // pred_region
          %s245 = smul.u32 7, %s17
          %p246 = scmp.lt.s32.totalorder %s245, 27
          %s247 = scalar_select %p246, %s245, 27
          %s248 = smul.addr %s247, 4
          %s249 = scalar_lea.vmem %s0, %s248
          %s250 = smul.u32 7, %s17
        $region44: #{tpu_custom_call.1} parent=39 // pred_fallthru
          _
      $region40: #{tpu_custom_call.1} parent=5 // pred_fallthru
        _
      %p251 = scmp.le.s32.totalorder 1, %s17
      %p252 = scmp.lt.s32.totalorder %s17, 5
      %p253 = pnand %p251, %p252
      %p254 = pneg %p253
      // Predicated region
      $region45: #{tpu_custom_call.1} parent=5 // pred_check
        _
      $region46: #{tpu_custom_call.1} parent=5 // pred_check_branch
        %256 = sbr.rel (%p253) target = $region48
      $region47: #{tpu_custom_call.1} parent=5 // pred_region
        %s257 = ssub.s32 %s17, 1
        // Predicated region
        $region49: #{tpu_custom_call.1} parent=47 // pred_check
          %p258 = pneg %p64
        $region50: #{tpu_custom_call.1} parent=47 // pred_check_branch
          %260 = sbr.rel (%p258) target = $region52
        $region51: #{tpu_custom_call.1} parent=47 // pred_region
          %261 = dma.done [#allocation3], 128
        $region52: #{tpu_custom_call.1} parent=47 // pred_fallthru
          _
        %s262 = smul.u32 7, %s22
        %p263 = scmp.lt.s32.totalorder %s262, 27
        %s264 = scalar_select %p263, %s262, 27
        %s265 = smul.addr %s264, 4
        %s266 = scalar_lea.vmem %s0, %s265
        %p267 = pneg %p43
        %p268 = pneg %p40
        %p269 = pneg %p64
        %p270 = pneg %p61
        %p271 = pneg %p85
        %p272 = pneg %p82
        %p273 = pneg %p106
        %p274 = pneg %p103
        %p275 = pneg %p127
        %p276 = pneg %p124
        %p277 = pneg %p148
        %p278 = pneg %p145
        %p279 = pneg %p169
        %p280 = pneg %p166
        %p281 = pneg %p195
        %p282 = pneg %p192
        %s283 = sand.u32 %s182, 1
        %s284 = scalar_lea.sflag [#allocation4], %s283
        %s285 = sand.u32 %s182, 1
        %s286 = smul.addr %s285, 56
        %s287 = scalar_lea.vmem [#allocation5], %s286
        %s288 = smul.u32 7, %s22
        %p289 = scmp.lt.s32.totalorder %s288, 27
        %s290 = scalar_select %p289, %s288, 27
        %s291 = smul.addr %s290, 4
        %s292 = scalar_lea.vmem %s0, %s291
        %s293 = smul.u32 7, %s22
        %s294 = smul.u32 7, %s22
        %v296 = vld [vmem:[%s292] sm:$0xf]
        %v297 = vld [vmem:[%s292 + $0x4] sm:$0xf]
        %v298 = vld [vmem:[%s292 + $0x8] sm:$0xf]
        %v299 = vld [vmem:[%s292 + $0xc] sm:$0xf]
        %v300 = vld [vmem:[%s292 + $0x10] sm:$0xf]
        %v301 = vld [vmem:[%s292 + $0x14] sm:$0xf]
        %v302 = vld [vmem:[%s292 + $0x18] sm:$0xf]
        %v303 = vld [vmem:[#allocation2] sm:$0xf]
        %v304 = vld [vmem:[#allocation2 + $0x4] sm:$0xf]
        %v305 = vld [vmem:[%s2] sm:$0x1]
        %v307 = vlaneseq
        %v308 = vshrl.u32 %v307, 7
        %v309 = vsub.s32 0, %v308
        %v310 = vrot.slane %v305, %v309
        %v319 = vunpack.c.l.b16 %v296
        %v320 = vunpack.c.l.b16 %v297
        %v321 = vunpack.c.l.b16 %v298
        %v322 = vunpack.c.l.b16 %v299
        %v323 = vunpack.c.l.b16 %v300
        %v324 = vunpack.c.l.b16 %v301
        %v325 = vunpack.c.l.b16 %v302
        %v326 = vpack.c.b16 %v320, %v319
        %v327 = vpack.c.b16 %v322, %v321
        %v328 = vpack.c.b16 %v324, %v323
        %v329 = vpack.c.b16 %v325, %v325
        %v332 = vunpack.c.l.b16 %v303
        %v333 = vunpack.c.l.b16 %v304
        %v334 = vpack.c.b16 %v333, %v332
        %vm336 = vcmask 130048
        %v338 = vsel %vm336, %v326, 0
        %v341 = vsel %vm336, %v327, 0
        %v344 = vsel %vm336, %v328, 0
        %v347 = vsel %vm336, %v329, 0
        %349 = vmatprep.subr.bf16.mxu0 0
        %350 = vmatpush1.bf16.msra.mxu0 0
        %351 = vmatprep.subr.bf16.mxu0 0
        %352 = vmatpush1.bf16.msra.mxu0 0
        %353 = vmatprep.subr.bf16.mxu0 0
        %354 = vmatpush1.bf16.msra.mxu0 0
        %355 = vmatprep.subr.bf16.mxu0 0
        %356 = vmatpush1.bf16.msra.mxu0 0
        %357 = vmatprep.subr.bf16.mxu0 0
        %358 = vmatpush1.bf16.msra.mxu0 0
        %359 = vmatprep.subr.bf16.mxu0 0
        %360 = vmatpush1.bf16.msra.mxu0 0
        %361 = vmatprep.subr.bf16.mxu0 0
        %362 = vmatpush1.bf16.msra.mxu0 0
        %363 = vmatprep.subr.bf16.mxu0 0
        %364 = vmatpush1.bf16.msra.mxu0 %v334
        %365 = vmatprep.subr.bf16.mxu0 0
        %366 = vmatpush2.bf16.msra.mxu0 0
        %367 = vmatprep.subr.bf16.mxu0 0
        %368 = vmatpush2.bf16.msra.mxu0 0
        %369 = vmatprep.subr.bf16.mxu0 0
        %370 = vmatpush2.bf16.msra.mxu0 0
        %371 = vmatprep.subr.bf16.mxu0 0
        %372 = vmatpush2.bf16.msra.mxu0 0
        %373 = vmatprep.subr.bf16.mxu0 0
        %374 = vmatpush2.bf16.msra.mxu0 0
        %375 = vmatprep.subr.bf16.mxu0 0
        %376 = vmatpush2.bf16.msra.mxu0 0
        %377 = vmatprep.subr.bf16.mxu0 0
        %378 = vmatpush2.bf16.msra.mxu0 0
        %379 = vmatprep.subr.bf16.mxu0 0
        %380 = vmatpush2.bf16.msra.mxu0 0
        %381 = vmatprep.mubr.bf16.mxu0 0
        %382 = vmatmul.mubr.bf16.gmra.mxu0 %v338
        %v383 = vpop.f32.mrf.mxu0
        %v384 = vadd.f32 %v310, %v383
        %v385 = vpop.f32.mrf.mxu0
        %v386 = vpop.f32.mrf.mxu0
        %v387 = vadd.f32 %v310, %v386
        %v388 = vpop.f32.mrf.mxu0
        %389 = vmatprep.mubr.bf16.mxu0 0
        %390 = vmatmul.mubr.bf16.gmra.mxu0 %v341
        %v391 = vpop.f32.mrf.mxu0
        %v392 = vadd.f32 %v310, %v391
        %v393 = vpop.f32.mrf.mxu0
        %v394 = vpop.f32.mrf.mxu0
        %v395 = vadd.f32 %v310, %v394
        %v396 = vpop.f32.mrf.mxu0
        %397 = vmatprep.mubr.bf16.mxu0 0
        %398 = vmatmul.mubr.bf16.gmra.mxu0 %v344
        %v399 = vpop.f32.mrf.mxu0
        %v400 = vadd.f32 %v310, %v399
        %v401 = vpop.f32.mrf.mxu0
        %v402 = vpop.f32.mrf.mxu0
        %v403 = vadd.f32 %v310, %v402
        %v404 = vpop.f32.mrf.mxu0
        %405 = vmatprep.mubr.bf16.mxu0 0
        %406 = vmatmul.mubr.bf16.gmra.mxu0 %v347
        %v407 = vpop.f32.mrf.mxu0
        %v408 = vadd.f32 %v310, %v407
        %v409 = vpop.f32.mrf.mxu0
        %v410 = vpop.f32.mrf.mxu0
        %v411 = vpop.f32.mrf.mxu0
        %412 = vdwg.mxu0
        %v413 = vpack.c.bf16 %v387, %v384
        %v414 = vpack.c.bf16 %v395, %v392
        %v415 = vpack.c.bf16 %v403, %v400
        %v416 = vpack.c.bf16 %v408, %v408
        %v417 = vld [vmem:[%s3] sm:$0xf]
        %v418 = vld [vmem:[%s3 + $0x4] sm:$0xf]
        %v419 = vld [vmem:[%s3 + $0x8] sm:$0xf]
        %v420 = vld [vmem:[%s3 + $0xc] sm:$0xf]
        %v421 = vld [vmem:[%s3 + $0x10] sm:$0xf]
        %v422 = vld [vmem:[%s3 + $0x14] sm:$0xf]
        %v423 = vld [vmem:[%s3 + $0x18] sm:$0xf]
        %v424 = vld [vmem:[%s3 + $0x1c] sm:$0xf]
        %v425 = vld [vmem:[%s3 + $0x20] sm:$0xf]
        %v426 = vld [vmem:[%s3 + $0x24] sm:$0xf]
        %v427 = vld [vmem:[%s3 + $0x28] sm:$0xf]
        %v428 = vld [vmem:[%s3 + $0x2c] sm:$0xf]
        %v429 = vld [vmem:[%s3 + $0x30] sm:$0xf]
        %v430 = vld [vmem:[%s3 + $0x34] sm:$0xf]
        %v431 = vld [vmem:[%s3 + $0x38] sm:$0xf]
        %v432 = vld [vmem:[%s3 + $0x3c] sm:$0xf]
        %v433 = vld [vmem:[%s4] sm:$0x1]
        %v435 = vlaneseq
        %v436 = vshrl.u32 %v435, 7
        %v437 = vsub.s32 0, %v436
        %v438 = vrot.slane %v433, %v437
        %v456 = vunpack.c.l.b16 %v417
        %v457 = vunpack.c.l.b16 %v418
        %v458 = vunpack.c.l.b16 %v419
        %v459 = vunpack.c.l.b16 %v420
        %v460 = vunpack.c.l.b16 %v421
        %v461 = vunpack.c.l.b16 %v422
        %v462 = vunpack.c.l.b16 %v423
        %v463 = vunpack.c.l.b16 %v424
        %v464 = vunpack.c.l.b16 %v425
        %v465 = vunpack.c.l.b16 %v426
        %v466 = vunpack.c.l.b16 %v427
        %v467 = vunpack.c.l.b16 %v428
        %v468 = vunpack.c.l.b16 %v429
        %v469 = vunpack.c.l.b16 %v430
        %v470 = vunpack.c.l.b16 %v431
        %v471 = vunpack.c.l.b16 %v432
        %v472 = vpack.c.b16 %v457, %v456
        %v473 = vpack.c.b16 %v459, %v458
        %v474 = vpack.c.b16 %v461, %v460
        %v475 = vpack.c.b16 %v463, %v462
        %v476 = vpack.c.b16 %v465, %v464
        %v477 = vpack.c.b16 %v467, %v466
        %v478 = vpack.c.b16 %v469, %v468
        %v479 = vpack.c.b16 %v471, %v470
        %488 = vmatprep.subr.bf16.mxu0 0
        %489 = vmatpush1.bf16.msra.mxu0 %v479
        %490 = vmatprep.subr.bf16.mxu0 0
        %491 = vmatpush1.bf16.msra.mxu0 %v478
        %492 = vmatprep.subr.bf16.mxu0 0
        %493 = vmatpush1.bf16.msra.mxu0 %v477
        %494 = vmatprep.subr.bf16.mxu0 0
        %495 = vmatpush1.bf16.msra.mxu0 %v476
        %496 = vmatprep.subr.bf16.mxu0 0
        %497 = vmatpush1.bf16.msra.mxu0 %v475
        %498 = vmatprep.subr.bf16.mxu0 0
        %499 = vmatpush1.bf16.msra.mxu0 %v474
        %500 = vmatprep.subr.bf16.mxu0 0
        %501 = vmatpush1.bf16.msra.mxu0 %v473
        %502 = vmatprep.subr.bf16.mxu0 0
        %503 = vmatpush1.bf16.msra.mxu0 %v472
        %504 = vmatprep.subr.bf16.mxu0 0
        %505 = vmatpush2.bf16.msra.mxu0 0
        %506 = vmatprep.subr.bf16.mxu0 0
        %507 = vmatpush2.bf16.msra.mxu0 0
        %508 = vmatprep.subr.bf16.mxu0 0
        %509 = vmatpush2.bf16.msra.mxu0 0
        %510 = vmatprep.subr.bf16.mxu0 0
        %511 = vmatpush2.bf16.msra.mxu0 0
        %512 = vmatprep.subr.bf16.mxu0 0
        %513 = vmatpush2.bf16.msra.mxu0 0
        %514 = vmatprep.subr.bf16.mxu0 0
        %515 = vmatpush2.bf16.msra.mxu0 0
        %516 = vmatprep.subr.bf16.mxu0 0
        %517 = vmatpush2.bf16.msra.mxu0 0
        %518 = vmatprep.subr.bf16.mxu0 0
        %519 = vmatpush2.bf16.msra.mxu0 0
        %520 = vmatprep.mubr.bf16.mxu0 0
        %521 = vmatmul.mubr.bf16.gmra.mxu0 %v413
        %v522 = vpop.f32.mrf.mxu0
        %v523 = vadd.f32 %v438, %v522
        %v524 = vpop.f32.mrf.mxu0
        %v525 = vpop.f32.mrf.mxu0
        %v526 = vadd.f32 %v438, %v525
        %v527 = vpop.f32.mrf.mxu0
        %528 = vmatprep.mubr.bf16.mxu0 0
        %529 = vmatmul.mubr.bf16.gmra.mxu0 %v414
        %v530 = vpop.f32.mrf.mxu0
        %v531 = vadd.f32 %v438, %v530
        %v532 = vpop.f32.mrf.mxu0
        %v533 = vpop.f32.mrf.mxu0
        %v534 = vadd.f32 %v438, %v533
        %v535 = vpop.f32.mrf.mxu0
        %536 = vmatprep.mubr.bf16.mxu0 0
        %537 = vmatmul.mubr.bf16.gmra.mxu0 %v415
        %v538 = vpop.f32.mrf.mxu0
        %v539 = vadd.f32 %v438, %v538
        %v540 = vpop.f32.mrf.mxu0
        %v541 = vpop.f32.mrf.mxu0
        %v542 = vadd.f32 %v438, %v541
        %v543 = vpop.f32.mrf.mxu0
        %544 = vmatprep.mubr.bf16.mxu0 0
        %545 = vmatmul.mubr.bf16.gmra.mxu0 %v416
        %v546 = vpop.f32.mrf.mxu0
        %v547 = vadd.f32 %v438, %v546
        %v548 = vpop.f32.mrf.mxu0
        %v549 = vpop.f32.mrf.mxu0
        %v550 = vpop.f32.mrf.mxu0
        %551 = vdwg.mxu0
        %v552 = vmax.f32 %v523, 0.0
        %v553 = vmax.f32 %v526, 0.0
        %v554 = vmax.f32 %v531, 0.0
        %v555 = vmax.f32 %v534, 0.0
        %v556 = vmax.f32 %v539, 0.0
        %v557 = vmax.f32 %v542, 0.0
        %v558 = vmax.f32 %v547, 0.0
        %v559 = vpack.c.bf16 %v553, %v552
        %v560 = vpack.c.bf16 %v555, %v554
        %v561 = vpack.c.bf16 %v557, %v556
        %v562 = vpack.c.bf16 %v558, %v558
        %v563 = vld [vmem:[%s5] sm:$0xf]
        %v564 = vld [vmem:[%s5 + $0x4] sm:$0xf]
        %v565 = vld [vmem:[%s5 + $0x8] sm:$0xf]
        %v566 = vld [vmem:[%s5 + $0xc] sm:$0xf]
        %v567 = vld [vmem:[%s5 + $0x10] sm:$0xf]
        %v568 = vld [vmem:[%s5 + $0x14] sm:$0xf]
        %v569 = vld [vmem:[%s5 + $0x18] sm:$0xf]
        %v570 = vld [vmem:[%s5 + $0x1c] sm:$0xf]
        %v571 = vld [vmem:[%s5 + $0x20] sm:$0xf]
        %v572 = vld [vmem:[%s5 + $0x24] sm:$0xf]
        %v573 = vld [vmem:[%s5 + $0x28] sm:$0xf]
        %v574 = vld [vmem:[%s5 + $0x2c] sm:$0xf]
        %v575 = vld [vmem:[%s5 + $0x30] sm:$0xf]
        %v576 = vld [vmem:[%s5 + $0x34] sm:$0xf]
        %v577 = vld [vmem:[%s5 + $0x38] sm:$0xf]
        %v578 = vld [vmem:[%s5 + $0x3c] sm:$0xf]
        %v579 = vld [vmem:[%s6] sm:$0x1]
        %v581 = vlaneseq
        %v582 = vshrl.u32 %v581, 7
        %v583 = vsub.s32 0, %v582
        %v584 = vrot.slane %v579, %v583
        %v602 = vunpack.c.l.b16 %v563
        %v603 = vunpack.c.l.b16 %v564
        %v604 = vunpack.c.l.b16 %v565
        %v605 = vunpack.c.l.b16 %v566
        %v606 = vunpack.c.l.b16 %v567
        %v607 = vunpack.c.l.b16 %v568
        %v608 = vunpack.c.l.b16 %v569
        %v609 = vunpack.c.l.b16 %v570
        %v610 = vunpack.c.l.b16 %v571
        %v611 = vunpack.c.l.b16 %v572
        %v612 = vunpack.c.l.b16 %v573
        %v613 = vunpack.c.l.b16 %v574
        %v614 = vunpack.c.l.b16 %v575
        %v615 = vunpack.c.l.b16 %v576
        %v616 = vunpack.c.l.b16 %v577
        %v617 = vunpack.c.l.b16 %v578
        %v618 = vpack.c.b16 %v603, %v602
        %v619 = vpack.c.b16 %v605, %v604
        %v620 = vpack.c.b16 %v607, %v606
        %v621 = vpack.c.b16 %v609, %v608
        %v622 = vpack.c.b16 %v611, %v610
        %v623 = vpack.c.b16 %v613, %v612
        %v624 = vpack.c.b16 %v615, %v614
        %v625 = vpack.c.b16 %v617, %v616
        %634 = vmatprep.subr.bf16.mxu0 0
        %635 = vmatpush1.bf16.msra.mxu0 %v625
        %636 = vmatprep.subr.bf16.mxu0 0
        %637 = vmatpush1.bf16.msra.mxu0 %v624
        %638 = vmatprep.subr.bf16.mxu0 0
        %639 = vmatpush1.bf16.msra.mxu0 %v623
        %640 = vmatprep.subr.bf16.mxu0 0
        %641 = vmatpush1.bf16.msra.mxu0 %v622
        %642 = vmatprep.subr.bf16.mxu0 0
        %643 = vmatpush1.bf16.msra.mxu0 %v621
        %644 = vmatprep.subr.bf16.mxu0 0
        %645 = vmatpush1.bf16.msra.mxu0 %v620
        %646 = vmatprep.subr.bf16.mxu0 0
        %647 = vmatpush1.bf16.msra.mxu0 %v619
        %648 = vmatprep.subr.bf16.mxu0 0
        %649 = vmatpush1.bf16.msra.mxu0 %v618
        %650 = vmatprep.subr.bf16.mxu0 0
        %651 = vmatpush2.bf16.msra.mxu0 0
        %652 = vmatprep.subr.bf16.mxu0 0
        %653 = vmatpush2.bf16.msra.mxu0 0
        %654 = vmatprep.subr.bf16.mxu0 0
        %655 = vmatpush2.bf16.msra.mxu0 0
        %656 = vmatprep.subr.bf16.mxu0 0
        %657 = vmatpush2.bf16.msra.mxu0 0
        %658 = vmatprep.subr.bf16.mxu0 0
        %659 = vmatpush2.bf16.msra.mxu0 0
        %660 = vmatprep.subr.bf16.mxu0 0
        %661 = vmatpush2.bf16.msra.mxu0 0
        %662 = vmatprep.subr.bf16.mxu0 0
        %663 = vmatpush2.bf16.msra.mxu0 0
        %664 = vmatprep.subr.bf16.mxu0 0
        %665 = vmatpush2.bf16.msra.mxu0 0
        %666 = vmatprep.mubr.bf16.mxu0 0
        %667 = vmatmul.mubr.bf16.gmra.mxu0 %v559
        %v668 = vpop.f32.mrf.mxu0
        %v669 = vadd.f32 %v584, %v668
        %v670 = vpop.f32.mrf.mxu0
        %v671 = vpop.f32.mrf.mxu0
        %v672 = vadd.f32 %v584, %v671
        %v673 = vpop.f32.mrf.mxu0
        %674 = vmatprep.mubr.bf16.mxu0 0
        %675 = vmatmul.mubr.bf16.gmra.mxu0 %v560
        %v676 = vpop.f32.mrf.mxu0
        %v677 = vadd.f32 %v584, %v676
        %v678 = vpop.f32.mrf.mxu0
        %v679 = vpop.f32.mrf.mxu0
        %v680 = vadd.f32 %v584, %v679
        %v681 = vpop.f32.mrf.mxu0
        %682 = vmatprep.mubr.bf16.mxu0 0
        %683 = vmatmul.mubr.bf16.gmra.mxu0 %v561
        %v684 = vpop.f32.mrf.mxu0
        %v685 = vadd.f32 %v584, %v684
        %v686 = vpop.f32.mrf.mxu0
        %v687 = vpop.f32.mrf.mxu0
        %v688 = vadd.f32 %v584, %v687
        %v689 = vpop.f32.mrf.mxu0
        %690 = vmatprep.mubr.bf16.mxu0 0
        %691 = vmatmul.mubr.bf16.gmra.mxu0 %v562
        %v692 = vpop.f32.mrf.mxu0
        %v693 = vadd.f32 %v584, %v692
        %v694 = vpop.f32.mrf.mxu0
        %v695 = vpop.f32.mrf.mxu0
        %v696 = vpop.f32.mrf.mxu0
        %697 = vdwg.mxu0
        %698 = vmax.xlane.f32.xlu0 %v669
        %v699 = vpop.xlane.xlu0 %698
        %700 = vmax.xlane.f32.xlu0 %v672
        %v701 = vpop.xlane.xlu0 %700
        %702 = vmax.xlane.f32.xlu0 %v677
        %v703 = vpop.xlane.xlu0 %702
        %704 = vmax.xlane.f32.xlu0 %v680
        %v705 = vpop.xlane.xlu0 %704
        %706 = vmax.xlane.f32.xlu0 %v685
        %v707 = vpop.xlane.xlu0 %706
        %708 = vmax.xlane.f32.xlu0 %v688
        %v709 = vpop.xlane.xlu0 %708
        %710 = vmax.xlane.f32.xlu0 %v693
        %v711 = vpop.xlane.xlu0 %710
        %v712 = vsub.f32 %v669, %v699
        %v713 = vsub.f32 %v672, %v701
        %v714 = vsub.f32 %v677, %v703
        %v715 = vsub.f32 %v680, %v705
        %v716 = vsub.f32 %v685, %v707
        %v717 = vsub.f32 %v688, %v709
        %v718 = vsub.f32 %v693, %v711
        %v719 = vmul.f32 %v712, 1.442695
        %v720 = vpow.pop %v719
        %v721 = vmul.f32 %v713, 1.442695
        %v722 = vpow.pop %v721
        %v723 = vmul.f32 %v714, 1.442695
        %v724 = vpow.pop %v723
        %v725 = vmul.f32 %v715, 1.442695
        %v726 = vpow.pop %v725
        %v727 = vmul.f32 %v716, 1.442695
        %v728 = vpow.pop %v727
        %v729 = vmul.f32 %v717, 1.442695
        %v730 = vpow.pop %v729
        %v731 = vmul.f32 %v718, 1.442695
        %v732 = vpow.pop %v731
        %733 = vadd.xlane.f32.xlu0 %v720
        %v734 = vpop.xlane.xlu0 %733
        %735 = vadd.xlane.f32.xlu0 %v722
        %v736 = vpop.xlane.xlu0 %735
        %737 = vadd.xlane.f32.xlu0 %v724
        %v738 = vpop.xlane.xlu0 %737
        %739 = vadd.xlane.f32.xlu0 %v726
        %v740 = vpop.xlane.xlu0 %739
        %741 = vadd.xlane.f32.xlu0 %v728
        %v742 = vpop.xlane.xlu0 %741
        %743 = vadd.xlane.f32.xlu0 %v730
        %v744 = vpop.xlane.xlu0 %743
        %745 = vadd.xlane.f32.xlu0 %v732
        %v746 = vpop.xlane.xlu0 %745
        %v747 = vlog2.pop %v734
        %v748 = vmul.f32 %v747, 0.6931472
        %v749 = vlog2.pop %v736
        %v750 = vmul.f32 %v749, 0.6931472
        %v751 = vlog2.pop %v738
        %v752 = vmul.f32 %v751, 0.6931472
        %v753 = vlog2.pop %v740
        %v754 = vmul.f32 %v753, 0.6931472
        %v755 = vlog2.pop %v742
        %v756 = vmul.f32 %v755, 0.6931472
        %v757 = vlog2.pop %v744
        %v758 = vmul.f32 %v757, 0.6931472
        %v759 = vlog2.pop %v746
        %v760 = vmul.f32 %v759, 0.6931472
        %v761 = vsub.f32 %v712, %v748
        %v762 = vsub.f32 %v713, %v750
        %v763 = vsub.f32 %v714, %v752
        %v764 = vsub.f32 %v715, %v754
        %v765 = vsub.f32 %v716, %v756
        %v766 = vsub.f32 %v717, %v758
        %v767 = vsub.f32 %v718, %v760
        %768 = vst [vmem:[%s287] sm:$0xff] %v761
        %769 = vst [vmem:[%s287 + $0x8] sm:$0xff] %v762
        %770 = vst [vmem:[%s287 + $0x10] sm:$0xff] %v763
        %771 = vst [vmem:[%s287 + $0x18] sm:$0xff] %v764
        %772 = vst [vmem:[%s287 + $0x20] sm:$0xff] %v765
        %773 = vst [vmem:[%s287 + $0x28] sm:$0xff] %v766
        %774 = vst [vmem:[%s287 + $0x30] sm:$0xff] %v767
        %s775 = sand.u32 %s182, 1
        %s776 = scalar_lea.sflag [#allocation4], %s775
        %s777 = sand.u32 %s182, 1
        %s778 = smul.addr %s777, 56
        %s779 = scalar_lea.vmem [#allocation5], %s778
        // Predicated region
        $region53: #{tpu_custom_call.1} parent=47 // pred_check
          %p780 = pneg %p192
        $region54: #{tpu_custom_call.1} parent=47 // pred_check_branch
          %782 = sbr.rel (%p780) target = $region56
        $region55: #{tpu_custom_call.1} parent=47 // pred_region
          %s783 = smul.u32 7, %s22
          %s785 = ssub.s32 896, 896
          %786 = vsyncadd %s776, %s785
          %s787 = smul.addr %s783, 128
          %s788 = scalar_lea.hbm %s7, %s787
          %s789 = sshll.u32 %s779, 4
          %s790 = int_to_ptr.vmem [resolvable:$true] %s789
          %795 = dma.vmem_to_hbm [thread:$0]  %s790, 896, %s788, %s776, 128, 128, 8
        $region56: #{tpu_custom_call.1} parent=47 // pred_fallthru
          _
      $region48: #{tpu_custom_call.1} parent=5 // pred_fallthru
        _
      %p796 = scmp.le.s32.totalorder 2, %s17
      // Predicated region
      $region57: #{tpu_custom_call.1} parent=5 // pred_check
        %p797 = pneg %p796
      $region58: #{tpu_custom_call.1} parent=5 // pred_check_branch
        %799 = sbr.rel (%p797) target = $region60
      $region59: #{tpu_custom_call.1} parent=5 // pred_region
        %s800 = ssub.s32 %s17, 2
        // Predicated region
        $region61: #{tpu_custom_call.1} parent=59 // pred_check
          %p801 = pneg %p198
        $region62: #{tpu_custom_call.1} parent=59 // pred_check_branch
          %803 = sbr.rel (%p801) target = $region64
        $region63: #{tpu_custom_call.1} parent=59 // pred_region
          %s804 = sand.u32 %s183, 1
          %s805 = scalar_lea.sflag [#allocation4], %s804
          %s806 = sand.u32 %s183, 1
          %s807 = smul.addr %s806, 56
          %s808 = scalar_lea.vmem [#allocation5], %s807
          %809 = dma.done %s805, 896
        $region64: #{tpu_custom_call.1} parent=59 // pred_fallthru
          _
      $region60: #{tpu_custom_call.1} parent=5 // pred_fallthru
        _
    $region6: #{tpu_custom_call.1} parent=1 // loop_footer
      %s21 = sadd.s32 1, %s17
    $region7: #{tpu_custom_call.1} parent=1 // loop_footer_branch
      %16 = sbr.rel target = $region3
    $region8: #{tpu_custom_call.1} parent=1 // loop_exit
      _
    %810 = vsyncpa [#allocation3], 1
    %s811 = scalar_lea.sflag [#allocation3], 1
    %812 = vsyncpa %s811, 1
    %813 = vsyncpa [#allocation4], 1
    %s814 = scalar_lea.sflag [#allocation4], 1
    %815 = vsyncpa %s814, 1

</llo_original>
